<compile_context>
chip_gen: v6e
topology: v6e:2x2x1
jax: 0.10.0
libtpu: 0.0.40
codegen_flags: <defaults>
</compile_context>

<pallas_src>
import functools

import jax
import jax.numpy as jnp
from jax.experimental import pallas as pl
from jax.experimental.pallas import tpu as pltpu

INPUT_SIZE = 784
HIDDEN_SIZE = 500
NUM_CLASSES = 10

# Lane-dense padded sizes.
HIDDEN_PAD = 512     # next multiple of 128 above 500
CLASSES_PAD = 128    # lane-dense output slab (unmasked 128-lane stores)

DEFAULT_BLOCK_B = 512


def _round_up(x, m):
    return (x + m - 1) // m * m


def _pick_tb(batch, block_b):
    """Batch tile: multiple of 16, <= block_b, aiming for >=2 grid steps."""
    b16 = _round_up(max(batch, 1), 16)
    half = _round_up((b16 + 1) // 2, 16)   # >=2 steps when possible (v7x megacore)
    return min(block_b, max(16, half))


def mlp_kernel(x_ref, w1_ref, b1_ref, w2_ref, b2_ref, o_ref):
    # Cast activations to bf16 in VMEM (no extra HBM pass in the wrapper).
    x = x_ref[...].astype(jnp.bfloat16)
    # fc1: [tb, 784]bf16 @ [784, 512]bf16 -> f32 acc, + b1 (f32), ReLU.
    h = jnp.dot(x, w1_ref[...], preferred_element_type=jnp.float32)
    h = jnp.maximum(h + b1_ref[...], 0.0)
    # fc2: [tb, 512]bf16 @ [512, 128]bf16 -> f32 acc, + b2 (f32).
    out = jnp.dot(h.astype(jnp.bfloat16), w2_ref[...],
                  preferred_element_type=jnp.float32)
    # Lane-dense (tb, 128) store; real logits live in lanes [0, 10).
    o_ref[...] = (out + b2_ref[...]).astype(o_ref.dtype)


def prepare_params(w1, b1, w2, b2):
    """Zero-pad to lane-dense shapes; weights bf16, biases f32."""
    w1p = jnp.zeros((INPUT_SIZE, HIDDEN_PAD), jnp.bfloat16)
    w1p = w1p.at[:, :HIDDEN_SIZE].set(w1.astype(jnp.bfloat16))
    b1p = jnp.zeros((1, HIDDEN_PAD), jnp.float32)
    b1p = b1p.at[:, :HIDDEN_SIZE].set(b1.reshape(1, HIDDEN_SIZE))
    w2p = jnp.zeros((HIDDEN_PAD, CLASSES_PAD), jnp.bfloat16)
    w2p = w2p.at[:HIDDEN_SIZE, :NUM_CLASSES].set(w2.astype(jnp.bfloat16))
    b2p = jnp.zeros((1, CLASSES_PAD), jnp.float32)
    b2p = b2p.at[:, :NUM_CLASSES].set(b2.reshape(1, NUM_CLASSES))
    return w1p, b1p, w2p, b2p


@functools.partial(jax.jit,
                   static_argnames=("block_b", "out_dtype", "slice_output"))
def neural_net_forward(x, w1p, b1p, w2p, b2p, *, block_b=DEFAULT_BLOCK_B,
                       out_dtype=jnp.float32, slice_output=True):
    """x: [B, 784] (f32 or bf16) -> logits [B, 10] (or [B, 128] padded slab)."""
    B = x.shape[0]
    tb = _pick_tb(B, block_b)

    out = pl.pallas_call(
        mlp_kernel,
        out_shape=jax.ShapeDtypeStruct((B, CLASSES_PAD), out_dtype),
        grid=(pl.cdiv(B, tb),),
        in_specs=[
            # x: tiled over the batch axis (pipelined / double-buffered);
            # ragged last block handled by Pallas block-boundary masking.
            pl.BlockSpec((tb, INPUT_SIZE), lambda i: (i, 0)),
            # Weights / biases: constant index_map -> loaded once, VMEM-resident.
            pl.BlockSpec((INPUT_SIZE, HIDDEN_PAD), lambda i: (0, 0)),
            pl.BlockSpec((1, HIDDEN_PAD), lambda i: (0, 0)),
            pl.BlockSpec((HIDDEN_PAD, CLASSES_PAD), lambda i: (0, 0)),
            pl.BlockSpec((1, CLASSES_PAD), lambda i: (0, 0)),
        ],
        out_specs=pl.BlockSpec((tb, CLASSES_PAD), lambda i: (i, 0)),
        compiler_params=pltpu.CompilerParams(
            dimension_semantics=("parallel",),  # megacore split on v7x
        ),
    )(x, w1p, b1p, w2p, b2p)

    if slice_output:
        out = out[:, :NUM_CLASSES]
    return out


def init_params(key):
    # Deterministic init mimicking torch.nn.Linear default:
    # U(-1/sqrt(fan_in), 1/sqrt(fan_in)) for both weight and bias.
    k1, k2, k3, k4 = jax.random.split(key, 4)
    bound1 = 1.0 / jnp.sqrt(jnp.float32(INPUT_SIZE))
    bound2 = 1.0 / jnp.sqrt(jnp.float32(HIDDEN_SIZE))
    # Stored as [in, out] so the kernel computes x @ W (same math as torch x @ W.T).
    w1 = jax.random.uniform(k1, (INPUT_SIZE, HIDDEN_SIZE), jnp.float32, -bound1, bound1)
    b1 = jax.random.uniform(k2, (1, HIDDEN_SIZE), jnp.float32, -bound1, bound1)
    w2 = jax.random.uniform(k3, (HIDDEN_SIZE, NUM_CLASSES), jnp.float32, -bound2, bound2)
    b2 = jax.random.uniform(k4, (1, NUM_CLASSES), jnp.float32, -bound2, bound2)
    return w1, b1, w2, b2


if __name__ == "__main__":
    key = jax.random.PRNGKey(0)
    pkey, xkey = jax.random.split(key)
    w1, b1, w2, b2 = init_params(pkey)
    w1p, b1p, w2p, b2p = prepare_params(w1, b1, w2, b2)

    batch = 32  # small demo; tile picker gives tb=16 -> 2 grid steps
    x = jax.random.normal(xkey, (batch, INPUT_SIZE), dtype=jnp.float32)

    out = neural_net_forward(x, w1p, b1p, w2p, b2p)
    jax.block_until_ready(out)

    # Pure-JAX reference of the same math (replicating the bf16 rounding the
    # kernel applies to x, W1, h, W2; accumulation in f32).
    x_r = x.astype(jnp.bfloat16).astype(jnp.float32)
    w1_r = w1.astype(jnp.bfloat16).astype(jnp.float32)
    w2_r = w2.astype(jnp.bfloat16).astype(jnp.float32)
    h_r = jnp.maximum(x_r @ w1_r + b1, 0.0)
    h_r = h_r.astype(jnp.bfloat16).astype(jnp.float32)
    ref = h_r @ w2_r + b2

    assert out.shape == (batch, NUM_CLASSES)
    assert jnp.allclose(out, ref, atol=5e-3, rtol=5e-3), (
        float(jnp.max(jnp.abs(out - ref))))

    print("KERNEL_OK")
</pallas_src>

<mosaic_0001>
module attributes {stable_mosaic.version = 11 : i64} {
  func.func @mlp_kernel(%arg0: i32, %arg1: memref<16x784xf32, #tpu.memory_space<vmem>>, %arg2: memref<784x512xbf16, #tpu.memory_space<vmem>>, %arg3: memref<1x512xf32, #tpu.memory_space<vmem>>, %arg4: memref<512x128xbf16, #tpu.memory_space<vmem>>, %arg5: memref<1x128xf32, #tpu.memory_space<vmem>>, %arg6: memref<16x128xf32, #tpu.memory_space<vmem>>) attributes {dimension_semantics = [#tpu.dimension_semantics<parallel>], iteration_bounds = array<i64: 2>, scalar_prefetch = 0 : i64, scratch_operands = 0 : i64, tpu.core_type = #tpu.core_type<tc>, window_params = [{transform_indices = @transform_0, window_bounds = array<i64: 16, 784>}, {pipeline_mode = #tpu.pipeline_mode<synchronous>, transform_indices = @transform_1, window_bounds = array<i64: 784, 512>}, {pipeline_mode = #tpu.pipeline_mode<synchronous>, transform_indices = @transform_2, window_bounds = array<i64: 1, 512>}, {pipeline_mode = #tpu.pipeline_mode<synchronous>, transform_indices = @transform_3, window_bounds = array<i64: 512, 128>}, {pipeline_mode = #tpu.pipeline_mode<synchronous>, transform_indices = @transform_4, window_bounds = array<i64: 1, 128>}, {transform_indices = @transform_5, window_bounds = array<i64: 16, 128>}]} {
    %c0 = arith.constant 0 : index
    %c0_0 = arith.constant 0 : index
    %0 = vector.load %arg1[%c0, %c0_0] : memref<16x784xf32, #tpu.memory_space<vmem>>, vector<16x784xf32>
    %1 = arith.truncf %0 : vector<16x784xf32> to vector<16x784xbf16>
    %c0_1 = arith.constant 0 : index
    %c0_2 = arith.constant 0 : index
    %2 = vector.load %arg2[%c0_1, %c0_2] : memref<784x512xbf16, #tpu.memory_space<vmem>>, vector<784x512xbf16>
    %cst = arith.constant dense<0.000000e+00> : vector<16x512xf32>
    %3 = tpu.matmul %1, %2, %cst {dimension_numbers = #tpu.dot_dimension_numbers<[1], [0], [0], [1], [0, 0, 1, 1], [], []>} : vector<16x784xbf16>, vector<784x512xbf16>, vector<16x512xf32> -> vector<16x512xf32>
    %c0_3 = arith.constant 0 : index
    %c0_4 = arith.constant 0 : index
    %4 = vector.load %arg3[%c0_3, %c0_4] : memref<1x512xf32, #tpu.memory_space<vmem>>, vector<1x512xf32>
    %5 = vector.broadcast %4 : vector<1x512xf32> to vector<16x512xf32>
    %6 = arith.addf %3, %5 : vector<16x512xf32>
    %cst_5 = arith.constant 0.000000e+00 : f32
    %7 = vector.broadcast %cst_5 : f32 to vector<16x512xf32>
    %8 = arith.maximumf %6, %7 : vector<16x512xf32>
    %9 = arith.truncf %8 : vector<16x512xf32> to vector<16x512xbf16>
    %c0_6 = arith.constant 0 : index
    %c0_7 = arith.constant 0 : index
    %10 = vector.load %arg4[%c0_6, %c0_7] : memref<512x128xbf16, #tpu.memory_space<vmem>>, vector<512x128xbf16>
    %cst_8 = arith.constant dense<0.000000e+00> : vector<16x128xf32>
    %11 = tpu.matmul %9, %10, %cst_8 {dimension_numbers = #tpu.dot_dimension_numbers<[1], [0], [0], [1], [0, 0, 1, 1], [], []>} : vector<16x512xbf16>, vector<512x128xbf16>, vector<16x128xf32> -> vector<16x128xf32>
    %c0_9 = arith.constant 0 : index
    %c0_10 = arith.constant 0 : index
    %12 = vector.load %arg5[%c0_9, %c0_10] : memref<1x128xf32, #tpu.memory_space<vmem>>, vector<1x128xf32>
    %13 = vector.broadcast %12 : vector<1x128xf32> to vector<16x128xf32>
    %14 = arith.addf %11, %13 : vector<16x128xf32>
    %c0_11 = arith.constant 0 : index
    %c0_12 = arith.constant 0 : index
    %15 = vector.load %arg6[%c0_11, %c0_12] : memref<16x128xf32, #tpu.memory_space<vmem>>, vector<16x128xf32>
    tpu.vector_store %arg6[%c0_11, %c0_12], %14 {strides = array<i32>} : memref<16x128xf32, #tpu.memory_space<vmem>>, vector<16x128xf32>,
    return
  }
  func.func @transform_0(%arg0: i32) -> (i32, i32) {
    %c0_i32 = arith.constant 0 : i32
    %c0_i32_0 = arith.constant 0 : i32
    return %arg0, %c0_i32 : i32, i32
  }
  func.func @transform_1(%arg0: i32) -> (i32, i32) {
    %c0_i32 = arith.constant 0 : i32
    %c0_i32_0 = arith.constant 0 : i32
    %c0_i32_1 = arith.constant 0 : i32
    return %c0_i32, %c0_i32_0 : i32, i32
  }
  func.func @transform_2(%arg0: i32) -> (i32, i32) {
    %c0_i32 = arith.constant 0 : i32
    %c0_i32_0 = arith.constant 0 : i32
    %c0_i32_1 = arith.constant 0 : i32
    return %c0_i32, %c0_i32_0 : i32, i32
  }
  func.func @transform_3(%arg0: i32) -> (i32, i32) {
    %c0_i32 = arith.constant 0 : i32
    %c0_i32_0 = arith.constant 0 : i32
    %c0_i32_1 = arith.constant 0 : i32
    return %c0_i32, %c0_i32_0 : i32, i32
  }
  func.func @transform_4(%arg0: i32) -> (i32, i32) {
    %c0_i32 = arith.constant 0 : i32
    %c0_i32_0 = arith.constant 0 : i32
    %c0_i32_1 = arith.constant 0 : i32
    return %c0_i32, %c0_i32_0 : i32, i32
  }
  func.func @transform_5(%arg0: i32) -> (i32, i32) {
    %c0_i32 = arith.constant 0 : i32
    %c0_i32_0 = arith.constant 0 : i32
    return %arg0, %c0_i32 : i32, i32
  }
}

</mosaic_0001>

<llo_original>
// kernel: neural_net_forward.1
$region0: #{neural_net_forward.1}
  #allocation0 [shape = 'u32[]', space=smem, size = 0x4, offset = 0x4, fixed_abs, tag = 'smem constant byte address 0x4 - core index']
  #allocation1 [shape = 'u32[144,128]{1,0:T(1,128)}', space=vmem, size = 0x12000, scoped, tag = 'internal scratch']
  %s0 = inlined_call_operand.hbm [shape: f32[32,784], index: 0, kind: input, shape index: {}]
  %s1 = inlined_call_operand.hbm [shape: bf16[784,512], index: 1, kind: input, shape index: {}]
  %s2 = inlined_call_operand.hbm [shape: f32[1,512], index: 2, kind: input, shape index: {}]
  %s3 = inlined_call_operand.hbm [shape: bf16[512,128], index: 3, kind: input, shape index: {}]
  %s4 = inlined_call_operand.vmem [shape: f32[1,128], index: 4, kind: input, shape index: {}]
  %s5 = inlined_call_operand.vmem [shape: f32[32,128], index: 5, kind: output, shape index: {}]
  %s6 = sld [smem:[#allocation0]]
  $region69: #{neural_net_forward.1} parent=0
    _
  %s8 = ssub.s32 1, %s6
  %s9 = scalar_select 0, %s8, %s6
  $region1: #{neural_net_forward.1} parent=0
    #allocation2 [shape = 'u8[114688]{0}', space=vmem, size = 0x1c000, scoped, tag = 'input window, operand 0']
    #allocation3 [shape = 's32[2]{0}', space=sflag, size = 0x8, scoped, tag = 'scoped memory for neural_net_forward.1']
    #allocation4 [shape = 'u8[802816]{0}', space=vmem, size = 0xc4000, scoped, tag = 'input window, operand 1, single buffered']
    #allocation5 [shape = 's32[1]{0}', space=sflag, size = 0x4, scoped, tag = 'scoped memory for neural_net_forward.1']
    #allocation6 [shape = 'u8[2048]{0}', space=vmem, size = 0x800, scoped, tag = 'input window, operand 2, single buffered']
    #allocation7 [shape = 'u8[131072]{0}', space=vmem, size = 0x20000, scoped, tag = 'input window, operand 3, single buffered']
    #allocation8 [shape = 's32[1]{0}', space=sflag, size = 0x4, scoped, tag = 'scoped memory for neural_net_forward.1']
    %10 = vsyncpa [#allocation3], 0
    %s11 = scalar_lea.sflag [#allocation3], 1
    %12 = vsyncpa %s11, 0
    %13 = vsyncpa [#allocation5], 0
    %14 = vsyncpa [#allocation8], 0
    loop: start=0, step=1, limit=4
    $region2: #{neural_net_forward.1} parent=1 // loop_pre_header
      _
    $region3: #{neural_net_forward.1} parent=1 // loop_header
      %s16 = sphi 0, %s20
      %p17 = scmp.ge.s32.totalorder %s16, 4
      %s26 = sphi 0, %s28
      %s29 = sphi 0, %s26
      %s30 = sphi 0, %s29
      %s46 = sphi 0, %s30
      %s50 = sphi 0, %s50
      %s52 = sphi 0, %s50
      %s53 = sphi 0, %s52
      %s67 = sphi 0, %s53
      %s71 = sphi 0, %s71
      %s73 = sphi 0, %s71
      %s74 = sphi 0, %s73
      %s88 = sphi 0, %s74
      %s92 = sphi 0, %s92
      %s94 = sphi 0, %s92
      %s95 = sphi 0, %s94
      %s109 = sphi 0, %s95
      %s113 = sphi 0, %s113
      %s115 = sphi 0, %s113
      %s116 = sphi 0, %s115
      %s130 = sphi 0, %s116
      %s136 = sphi 0, %s138
      %s139 = sphi 0, %s136
      %s140 = sphi 0, %s139
      %s156 = sphi 0, %s140
    $region4: #{neural_net_forward.1} parent=1 // loop_header_branch
      %19 = sbr.rel (%p17) target = $region8
    $region5: #{neural_net_forward.1} parent=1 // loop_body
      %s21 = ssub.s32 %s16, 1
      %s22 = ssub.s32 %s16, 2
      %s23 = sadd.s32 %s16, 1
      %s24 = ssub.s32 %s16, %s23
      %p25 = scmp.eq.s32.totalorder %s24, 0
      %s27 = sadd.s32 %s26, 1
      %s28 = scalar_select %p25, %s26, %s27
      %p31 = pneg %p25
      %p32 = scmp.eq.s32.totalorder %s16, 1
      %p33 = por %p31, %p32
      %p34 = scmp.ne.s32.totalorder %s26, %s29
      %p35 = scmp.eq.s32.totalorder %s16, 0
      %p36 = por %p34, %p35
      %p37 = scmp.ne.s32.totalorder %s26, %s29
      %p38 = scmp.eq.s32.totalorder %s21, 1
      %p39 = por %p37, %p38
      %p40 = scmp.ne.s32.totalorder %s29, %s30
      %p41 = scmp.eq.s32.totalorder %s21, 0
      %p42 = por %p40, %p41
      %p43 = scmp.ne.s32.totalorder %s29, %s30
      %p44 = scmp.eq.s32.totalorder %s22, 1
      %p45 = por %p43, %p44
      %p47 = scmp.ne.s32.totalorder %s30, %s46
      %p48 = scmp.eq.s32.totalorder %s22, 0
      %p49 = por %p47, %p48
      %s51 = sadd.s32 %s50, 1
      %p54 = scmp.eq.s32.totalorder %s16, 1
      %p55 = scmp.ne.s32.totalorder %s50, %s52
      %p56 = scmp.eq.s32.totalorder %s16, 0
      %p57 = por %p55, %p56
      %p58 = scmp.ne.s32.totalorder %s50, %s52
      %p59 = scmp.eq.s32.totalorder %s21, 1
      %p60 = por %p58, %p59
      %p61 = scmp.ne.s32.totalorder %s52, %s53
      %p62 = scmp.eq.s32.totalorder %s21, 0
      %p63 = por %p61, %p62
      %p64 = scmp.ne.s32.totalorder %s52, %s53
      %p65 = scmp.eq.s32.totalorder %s22, 1
      %p66 = por %p64, %p65
      %p68 = scmp.ne.s32.totalorder %s53, %s67
      %p69 = scmp.eq.s32.totalorder %s22, 0
      %p70 = por %p68, %p69
      %s72 = sadd.s32 %s71, 1
      %p75 = scmp.eq.s32.totalorder %s16, 1
      %p76 = scmp.ne.s32.totalorder %s71, %s73
      %p77 = scmp.eq.s32.totalorder %s16, 0
      %p78 = por %p76, %p77
      %p79 = scmp.ne.s32.totalorder %s71, %s73
      %p80 = scmp.eq.s32.totalorder %s21, 1
      %p81 = por %p79, %p80
      %p82 = scmp.ne.s32.totalorder %s73, %s74
      %p83 = scmp.eq.s32.totalorder %s21, 0
      %p84 = por %p82, %p83
      %p85 = scmp.ne.s32.totalorder %s73, %s74
      %p86 = scmp.eq.s32.totalorder %s22, 1
      %p87 = por %p85, %p86
      %p89 = scmp.ne.s32.totalorder %s74, %s88
      %p90 = scmp.eq.s32.totalorder %s22, 0
      %p91 = por %p89, %p90
      %s93 = sadd.s32 %s92, 1
      %p96 = scmp.eq.s32.totalorder %s16, 1
      %p97 = scmp.ne.s32.totalorder %s92, %s94
      %p98 = scmp.eq.s32.totalorder %s16, 0
      %p99 = por %p97, %p98
      %p100 = scmp.ne.s32.totalorder %s92, %s94
      %p101 = scmp.eq.s32.totalorder %s21, 1
      %p102 = por %p100, %p101
      %p103 = scmp.ne.s32.totalorder %s94, %s95
      %p104 = scmp.eq.s32.totalorder %s21, 0
      %p105 = por %p103, %p104
      %p106 = scmp.ne.s32.totalorder %s94, %s95
      %p107 = scmp.eq.s32.totalorder %s22, 1
      %p108 = por %p106, %p107
      %p110 = scmp.ne.s32.totalorder %s95, %s109
      %p111 = scmp.eq.s32.totalorder %s22, 0
      %p112 = por %p110, %p111
      %s114 = sadd.s32 %s113, 1
      %p117 = scmp.eq.s32.totalorder %s16, 1
      %p118 = scmp.ne.s32.totalorder %s113, %s115
      %p119 = scmp.eq.s32.totalorder %s16, 0
      %p120 = por %p118, %p119
      %p121 = scmp.ne.s32.totalorder %s113, %s115
      %p122 = scmp.eq.s32.totalorder %s21, 1
      %p123 = por %p121, %p122
      %p124 = scmp.ne.s32.totalorder %s115, %s116
      %p125 = scmp.eq.s32.totalorder %s21, 0
      %p126 = por %p124, %p125
      %p127 = scmp.ne.s32.totalorder %s115, %s116
      %p128 = scmp.eq.s32.totalorder %s22, 1
      %p129 = por %p127, %p128
      %p131 = scmp.ne.s32.totalorder %s116, %s130
      %p132 = scmp.eq.s32.totalorder %s22, 0
      %p133 = por %p131, %p132
      %s134 = ssub.s32 %s16, %s23
      %p135 = scmp.eq.s32.totalorder %s134, 0
      %s137 = sadd.s32 %s136, 1
      %s138 = scalar_select %p135, %s136, %s137
      %p141 = pneg %p135
      %p142 = scmp.eq.s32.totalorder %s16, 1
      %p143 = por %p141, %p142
      %p144 = scmp.ne.s32.totalorder %s136, %s139
      %p145 = scmp.eq.s32.totalorder %s16, 0
      %p146 = por %p144, %p145
      %p147 = scmp.ne.s32.totalorder %s136, %s139
      %p148 = scmp.eq.s32.totalorder %s21, 1
      %p149 = por %p147, %p148
      %p150 = scmp.ne.s32.totalorder %s139, %s140
      %p151 = scmp.eq.s32.totalorder %s21, 0
      %p152 = por %p150, %p151
      %p153 = scmp.ne.s32.totalorder %s139, %s140
      %p154 = scmp.eq.s32.totalorder %s22, 1
      %p155 = por %p153, %p154
      %p157 = scmp.ne.s32.totalorder %s140, %s156
      %p158 = scmp.eq.s32.totalorder %s22, 0
      %p159 = por %p157, %p158
      %p160 = scmp.le.s32.totalorder 1, %s16
      %p161 = scmp.lt.s32.totalorder %s16, 3
      %p162 = pnand %p160, %p161
      %p163 = pneg %p162
      // Predicated region
      $region9: #{neural_net_forward.1} parent=5 // pred_check
        _
      $region10: #{neural_net_forward.1} parent=5 // pred_check_branch
        %165 = sbr.rel (%p162) target = $region12
      $region11: #{neural_net_forward.1} parent=5 // pred_region
        %s166 = ssub.s32 %s16, 1
        // Predicated region
        $region13: #{neural_net_forward.1} parent=11 // pred_check
          %p167 = pneg %p63
        $region14: #{neural_net_forward.1} parent=11 // pred_check_branch
          %169 = sbr.rel (%p167) target = $region16
        $region15: #{neural_net_forward.1} parent=11 // pred_region
          %s171 = ssub.s32 25088, 25088
          %172 = vsyncadd [#allocation5], %s171
          %s173 = sshll.u32 [#allocation4], 4
          %s174 = int_to_ptr.vmem [resolvable:$true] %s173
          %179 = dma.hbm_to_vmem [thread:$0]  %s1, 25088, %s174, [#allocation5], 256, 256, 16
        $region16: #{neural_net_forward.1} parent=11 // pred_fallthru
          _
        // Predicated region
        $region17: #{neural_net_forward.1} parent=11 // pred_check
          %p180 = pneg %p84
        $region18: #{neural_net_forward.1} parent=11 // pred_check_branch
          %182 = sbr.rel (%p180) target = $region20
        $region19: #{neural_net_forward.1} parent=11 // pred_region
          %s184 = ssub.s32 64, 64
          %185 = vsyncadd [#allocation5], %s184
          %s187 = sshll.u32 [#allocation6], 4
          %s188 = int_to_ptr.vmem [resolvable:$true] %s187
          %190 = dma.hbm_to_vmem [thread:$0]  %s2, 64, %s188, [#allocation5]
        $region20: #{neural_net_forward.1} parent=11 // pred_fallthru
          _
        // Predicated region
        $region21: #{neural_net_forward.1} parent=11 // pred_check
          %p191 = pneg %p105
        $region22: #{neural_net_forward.1} parent=11 // pred_check_branch
          %193 = sbr.rel (%p191) target = $region24
        $region23: #{neural_net_forward.1} parent=11 // pred_region
          %s195 = ssub.s32 4096, 4096
          %196 = vsyncadd [#allocation8], %s195
          %s197 = sshll.u32 [#allocation7], 4
          %s198 = int_to_ptr.vmem [resolvable:$true] %s197
          %203 = dma.hbm_to_vmem [thread:$0]  %s3, 4096, %s198, [#allocation8], 64, 64, 4
        $region24: #{neural_net_forward.1} parent=11 // pred_fallthru
          _
        // Predicated region
        $region25: #{neural_net_forward.1} parent=11 // pred_check
          %p204 = pneg %p126
        $region26: #{neural_net_forward.1} parent=11 // pred_check_branch
          %206 = sbr.rel (%p204) target = $region28
        $region27: #{neural_net_forward.1} parent=11 // pred_region
          _
        $region28: #{neural_net_forward.1} parent=11 // pred_fallthru
          _
      $region12: #{neural_net_forward.1} parent=5 // pred_fallthru
        _
      %p207 = scmp.lt.s32.totalorder %s16, 2
      // Predicated region
      $region29: #{neural_net_forward.1} parent=5 // pred_check
        %p208 = pneg %p207
      $region30: #{neural_net_forward.1} parent=5 // pred_check_branch
        %210 = sbr.rel (%p208) target = $region32
      $region31: #{neural_net_forward.1} parent=5 // pred_region
        // Predicated region
        $region33: #{neural_net_forward.1} parent=31 // pred_check
          %p211 = pneg %p36
        $region34: #{neural_net_forward.1} parent=31 // pred_check_branch
          %213 = sbr.rel (%p211) target = $region36
        $region35: #{neural_net_forward.1} parent=31 // pred_region
          %s214 = sand.u32 %s26, 1
          %s215 = scalar_lea.sflag [#allocation3], %s214
          %s216 = sand.u32 %s26, 1
          %s217 = smul.addr %s216, 112
          %s218 = scalar_lea.vmem [#allocation2], %s217
          %s219 = smul.u32 2, %s16
          %s221 = ssub.s32 1792, 1792
          %222 = vsyncadd %s215, %s221
          %s223 = smul.addr %s219, 7
          %s224 = smul.addr %s223, 128
          %s225 = scalar_lea.hbm %s0, %s224
          %s226 = sshll.u32 %s218, 4
          %s227 = int_to_ptr.vmem [resolvable:$true] %s226
          %232 = dma.hbm_to_vmem [thread:$0]  %s225, 1792, %s227, %s215, 896, 896, 56
        $region36: #{neural_net_forward.1} parent=31 // pred_fallthru
          _
      $region32: #{neural_net_forward.1} parent=5 // pred_fallthru
        _
      %p233 = scmp.le.s32.totalorder 1, %s16
      %p234 = scmp.lt.s32.totalorder %s16, 3
      %p235 = pnand %p233, %p234
      %p236 = pneg %p235
      // Predicated region
      $region37: #{neural_net_forward.1} parent=5 // pred_check
        _
      $region38: #{neural_net_forward.1} parent=5 // pred_check_branch
        %238 = sbr.rel (%p235) target = $region40
      $region39: #{neural_net_forward.1} parent=5 // pred_region
        %s239 = ssub.s32 %s16, 1
        %s240 = sand.u32 %s29, 1
        %s241 = scalar_lea.sflag [#allocation3], %s240
        %s242 = sand.u32 %s29, 1
        %s243 = smul.addr %s242, 112
        %s244 = scalar_lea.vmem [#allocation2], %s243
        // Predicated region
        $region41: #{neural_net_forward.1} parent=39 // pred_check
          %p245 = pneg %p42
        $region42: #{neural_net_forward.1} parent=39 // pred_check_branch
          %247 = sbr.rel (%p245) target = $region44
        $region43: #{neural_net_forward.1} parent=39 // pred_region
          %248 = dma.done %s241, 1792
        $region44: #{neural_net_forward.1} parent=39 // pred_fallthru
          _
        // Predicated region
        $region45: #{neural_net_forward.1} parent=39 // pred_check
          %p249 = pneg %p63
        $region46: #{neural_net_forward.1} parent=39 // pred_check_branch
          %251 = sbr.rel (%p249) target = $region48
        $region47: #{neural_net_forward.1} parent=39 // pred_region
          %252 = dma.done [#allocation5], 25088
        $region48: #{neural_net_forward.1} parent=39 // pred_fallthru
          _
        // Predicated region
        $region49: #{neural_net_forward.1} parent=39 // pred_check
          %p253 = pneg %p84
        $region50: #{neural_net_forward.1} parent=39 // pred_check_branch
          %255 = sbr.rel (%p253) target = $region52
        $region51: #{neural_net_forward.1} parent=39 // pred_region
          %256 = dma.done [#allocation5], 64
        $region52: #{neural_net_forward.1} parent=39 // pred_fallthru
          _
        // Predicated region
        $region53: #{neural_net_forward.1} parent=39 // pred_check
          %p257 = pneg %p105
        $region54: #{neural_net_forward.1} parent=39 // pred_check_branch
          %259 = sbr.rel (%p257) target = $region56
        $region55: #{neural_net_forward.1} parent=39 // pred_region
          %260 = dma.done [#allocation8], 4096
        $region56: #{neural_net_forward.1} parent=39 // pred_fallthru
          _
        %s261 = sand.u32 %s29, 1
        %s262 = scalar_lea.sflag [#allocation3], %s261
        %s263 = sand.u32 %s29, 1
        %s264 = smul.addr %s263, 112
        %s265 = scalar_lea.vmem [#allocation2], %s264
        %p266 = pneg %p42
        %p267 = pneg %p39
        %p268 = pneg %p63
        %p269 = pneg %p60
        %p270 = pneg %p84
        %p271 = pneg %p81
        %p272 = pneg %p105
        %p273 = pneg %p102
        %p274 = pneg %p126
        %p275 = pneg %p123
        %p276 = pneg %p152
        %p277 = pneg %p149
        %s278 = smul.u32 2, %s21
        %p279 = scmp.lt.s32.totalorder %s278, 3
        %s280 = scalar_select %p279, %s278, 3
        %s281 = smul.addr %s280, 8
        %s282 = scalar_lea.vmem %s5, %s281
        %s283 = smul.u32 2, %s21
        %s284 = smul.u32 2, %s21
        %p285 = scmp.lt.s32.totalorder %s284, 3
        %s286 = scalar_select %p285, %s284, 3
        %s287 = smul.addr %s286, 8
        %s288 = scalar_lea.vmem %s5, %s287
        %s289 = smul.u32 2, %s21
        %v291 = vld [vmem:[%s244] sm:$0xff]
        %v292 = vld [vmem:[%s244 + $0x8] sm:$0xff]
        %v293 = vld [vmem:[%s244 + $0x10] sm:$0xff]
        %v294 = vld [vmem:[%s244 + $0x18] sm:$0xff]
        %v295 = vld [vmem:[%s244 + $0x20] sm:$0xff]
        %v296 = vld [vmem:[%s244 + $0x28] sm:$0xff]
        %v297 = vld [vmem:[%s244 + $0x30] sm:$0xff]
        %v298 = vld [vmem:[%s244 + $0x38] sm:$0xff]
        %v299 = vld [vmem:[%s244 + $0x40] sm:$0xff]
        %v300 = vld [vmem:[%s244 + $0x48] sm:$0xff]
        %v301 = vld [vmem:[%s244 + $0x50] sm:$0xff]
        %v302 = vld [vmem:[%s244 + $0x58] sm:$0xff]
        %v303 = vld [vmem:[%s244 + $0x60] sm:$0xff]
        %v304 = vld [vmem:[%s244 + $0x68] sm:$0xff]
        %v305 = vpack.c.bf16 %v298, %v291
        %v306 = vpack.c.bf16 %v299, %v292
        %v307 = vpack.c.bf16 %v300, %v293
        %v308 = vpack.c.bf16 %v301, %v294
        %v309 = vpack.c.bf16 %v302, %v295
        %v310 = vpack.c.bf16 %v303, %v296
        %v311 = vpack.c.bf16 %v304, %v297
        %v312 = vld [vmem:[#allocation4] sm:$0xff]
        %v313 = vld [vmem:[#allocation4 + $0x8] sm:$0xff]
        %v314 = vld [vmem:[#allocation4 + $0x10] sm:$0xff]
        %v315 = vld [vmem:[#allocation4 + $0x18] sm:$0xff]
        %v316 = vld [vmem:[#allocation4 + $0x20] sm:$0xff]
        %v317 = vld [vmem:[#allocation4 + $0x28] sm:$0xff]
        %v318 = vld [vmem:[#allocation4 + $0x30] sm:$0xff]
        %v319 = vld [vmem:[#allocation4 + $0x38] sm:$0xff]
        %v320 = vld [vmem:[#allocation4 + $0x40] sm:$0xff]
        %v321 = vld [vmem:[#allocation4 + $0x48] sm:$0xff]
        %v322 = vld [vmem:[#allocation4 + $0x50] sm:$0xff]
        %v323 = vld [vmem:[#allocation4 + $0x58] sm:$0xff]
        %v324 = vld [vmem:[#allocation4 + $0x60] sm:$0xff]
        %v325 = vld [vmem:[#allocation4 + $0x68] sm:$0xff]
        %v326 = vld [vmem:[#allocation4 + $0x70] sm:$0xff]
        %v327 = vld [vmem:[#allocation4 + $0x78] sm:$0xff]
        %v328 = vld [vmem:[#allocation4 + $0x80] sm:$0xff]
        %v329 = vld [vmem:[#allocation4 + $0x88] sm:$0xff]
        %v330 = vld [vmem:[#allocation4 + $0x90] sm:$0xff]
        %v331 = vld [vmem:[#allocation4 + $0x98] sm:$0xff]
        %v332 = vld [vmem:[#allocation4 + $0xa0] sm:$0xff]
        %v333 = vld [vmem:[#allocation4 + $0xa8] sm:$0xff]
        %v334 = vld [vmem:[#allocation4 + $0xb0] sm:$0xff]
        %v335 = vld [vmem:[#allocation4 + $0xb8] sm:$0xff]
        %v336 = vld [vmem:[#allocation4 + $0xc0] sm:$0xff]
        %v337 = vld [vmem:[#allocation4 + $0xc8] sm:$0xff]
        %v338 = vld [vmem:[#allocation4 + $0xd0] sm:$0xff]
        %v339 = vld [vmem:[#allocation4 + $0xd8] sm:$0xff]
        %v340 = vld [vmem:[#allocation4 + $0xe0] sm:$0xff]
        %v341 = vld [vmem:[#allocation4 + $0xe8] sm:$0xff]
        %v342 = vld [vmem:[#allocation4 + $0xf0] sm:$0xff]
        %v343 = vld [vmem:[#allocation4 + $0xf8] sm:$0xff]
        %v344 = vld [vmem:[#allocation4 + $0x100] sm:$0xff]
        %v345 = vld [vmem:[#allocation4 + $0x108] sm:$0xff]
        %v346 = vld [vmem:[#allocation4 + $0x110] sm:$0xff]
        %v347 = vld [vmem:[#allocation4 + $0x118] sm:$0xff]
        %v348 = vld [vmem:[#allocation4 + $0x120] sm:$0xff]
        %v349 = vld [vmem:[#allocation4 + $0x128] sm:$0xff]
        %v350 = vld [vmem:[#allocation4 + $0x130] sm:$0xff]
        %v351 = vld [vmem:[#allocation4 + $0x138] sm:$0xff]
        %v352 = vld [vmem:[#allocation4 + $0x140] sm:$0xff]
        %v353 = vld [vmem:[#allocation4 + $0x148] sm:$0xff]
        %v354 = vld [vmem:[#allocation4 + $0x150] sm:$0xff]
        %v355 = vld [vmem:[#allocation4 + $0x158] sm:$0xff]
        %v356 = vld [vmem:[#allocation4 + $0x160] sm:$0xff]
        %v357 = vld [vmem:[#allocation4 + $0x168] sm:$0xff]
        %v358 = vld [vmem:[#allocation4 + $0x170] sm:$0xff]
        %v359 = vld [vmem:[#allocation4 + $0x178] sm:$0xff]
        %v360 = vld [vmem:[#allocation4 + $0x180] sm:$0xff]
        %v361 = vld [vmem:[#allocation4 + $0x188] sm:$0xff]
        %v362 = vld [vmem:[#allocation4 + $0x190] sm:$0xff]
        %v363 = vld [vmem:[#allocation4 + $0x198] sm:$0xff]
        %v364 = vld [vmem:[#allocation4 + $0x1a0] sm:$0xff]
        %v365 = vld [vmem:[#allocation4 + $0x1a8] sm:$0xff]
        %v366 = vld [vmem:[#allocation4 + $0x1b0] sm:$0xff]
        %v367 = vld [vmem:[#allocation4 + $0x1b8] sm:$0xff]
        %v368 = vld [vmem:[#allocation4 + $0x1c0] sm:$0xff]
        %v369 = vld [vmem:[#allocation4 + $0x1c8] sm:$0xff]
        %v370 = vld [vmem:[#allocation4 + $0x1d0] sm:$0xff]
        %v371 = vld [vmem:[#allocation4 + $0x1d8] sm:$0xff]
        %v372 = vld [vmem:[#allocation4 + $0x1e0] sm:$0xff]
        %v373 = vld [vmem:[#allocation4 + $0x1e8] sm:$0xff]
        %v374 = vld [vmem:[#allocation4 + $0x1f0] sm:$0xff]
        %v375 = vld [vmem:[#allocation4 + $0x1f8] sm:$0xff]
        %v376 = vld [vmem:[#allocation4 + $0x200] sm:$0xff]
        %v377 = vld [vmem:[#allocation4 + $0x208] sm:$0xff]
        %v378 = vld [vmem:[#allocation4 + $0x210] sm:$0xff]
        %v379 = vld [vmem:[#allocation4 + $0x218] sm:$0xff]
        %v380 = vld [vmem:[#allocation4 + $0x220] sm:$0xff]
        %v381 = vld [vmem:[#allocation4 + $0x228] sm:$0xff]
        %v382 = vld [vmem:[#allocation4 + $0x230] sm:$0xff]
        %v383 = vld [vmem:[#allocation4 + $0x238] sm:$0xff]
        %v384 = vld [vmem:[#allocation4 + $0x240] sm:$0xff]
        %v385 = vld [vmem:[#allocation4 + $0x248] sm:$0xff]
        %v386 = vld [vmem:[#allocation4 + $0x250] sm:$0xff]
        %v387 = vld [vmem:[#allocation4 + $0x258] sm:$0xff]
        %v388 = vld [vmem:[#allocation4 + $0x260] sm:$0xff]
        %v389 = vld [vmem:[#allocation4 + $0x268] sm:$0xff]
        %v390 = vld [vmem:[#allocation4 + $0x270] sm:$0xff]
        %v391 = vld [vmem:[#allocation4 + $0x278] sm:$0xff]
        %v392 = vld [vmem:[#allocation4 + $0x280] sm:$0xff]
        %v393 = vld [vmem:[#allocation4 + $0x288] sm:$0xff]
        %v394 = vld [vmem:[#allocation4 + $0x290] sm:$0xff]
        %v395 = vld [vmem:[#allocation4 + $0x298] sm:$0xff]
        %v396 = vld [vmem:[#allocation4 + $0x2a0] sm:$0xff]
        %v397 = vld [vmem:[#allocation4 + $0x2a8] sm:$0xff]
        %v398 = vld [vmem:[#allocation4 + $0x2b0] sm:$0xff]
        %v399 = vld [vmem:[#allocation4 + $0x2b8] sm:$0xff]
        %v400 = vld [vmem:[#allocation4 + $0x2c0] sm:$0xff]
        %v401 = vld [vmem:[#allocation4 + $0x2c8] sm:$0xff]
        %v402 = vld [vmem:[#allocation4 + $0x2d0] sm:$0xff]
        %v403 = vld [vmem:[#allocation4 + $0x2d8] sm:$0xff]
        %v404 = vld [vmem:[#allocation4 + $0x2e0] sm:$0xff]
        %v405 = vld [vmem:[#allocation4 + $0x2e8] sm:$0xff]
        %v406 = vld [vmem:[#allocation4 + $0x2f0] sm:$0xff]
        %v407 = vld [vmem:[#allocation4 + $0x2f8] sm:$0xff]
        %v408 = vld [vmem:[#allocation4 + $0x300] sm:$0xff]
        %v409 = vld [vmem:[#allocation4 + $0x308] sm:$0xff]
        %v410 = vld [vmem:[#allocation4 + $0x310] sm:$0xff]
        %v411 = vld [vmem:[#allocation4 + $0x318] sm:$0xff]
        %v412 = vld [vmem:[#allocation4 + $0x320] sm:$0xff]
        %v413 = vld [vmem:[#allocation4 + $0x328] sm:$0xff]
        %v414 = vld [vmem:[#allocation4 + $0x330] sm:$0xff]
        %v415 = vld [vmem:[#allocation4 + $0x338] sm:$0xff]
        %v416 = vld [vmem:[#allocation4 + $0x340] sm:$0xff]
        %v417 = vld [vmem:[#allocation4 + $0x348] sm:$0xff]
        %v418 = vld [vmem:[#allocation4 + $0x350] sm:$0xff]
        %v419 = vld [vmem:[#allocation4 + $0x358] sm:$0xff]
        %v420 = vld [vmem:[#allocation4 + $0x360] sm:$0xff]
        %v421 = vld [vmem:[#allocation4 + $0x368] sm:$0xff]
        %v422 = vld [vmem:[#allocation4 + $0x370] sm:$0xff]
        %v423 = vld [vmem:[#allocation4 + $0x378] sm:$0xff]
        %v424 = vld [vmem:[#allocation4 + $0x380] sm:$0xff]
        %v425 = vld [vmem:[#allocation4 + $0x388] sm:$0xff]
        %v426 = vld [vmem:[#allocation4 + $0x390] sm:$0xff]
        %v427 = vld [vmem:[#allocation4 + $0x398] sm:$0xff]
        %v428 = vld [vmem:[#allocation4 + $0x3a0] sm:$0xff]
        %v429 = vld [vmem:[#allocation4 + $0x3a8] sm:$0xff]
        %v430 = vld [vmem:[#allocation4 + $0x3b0] sm:$0xff]
        %v431 = vld [vmem:[#allocation4 + $0x3b8] sm:$0xff]
        %v432 = vld [vmem:[#allocation4 + $0x3c0] sm:$0xff]
        %v433 = vld [vmem:[#allocation4 + $0x3c8] sm:$0xff]
        %v434 = vld [vmem:[#allocation4 + $0x3d0] sm:$0xff]
        %v435 = vld [vmem:[#allocation4 + $0x3d8] sm:$0xff]
        %v436 = vld [vmem:[#allocation4 + $0x3e0] sm:$0xff]
        %v437 = vld [vmem:[#allocation4 + $0x3e8] sm:$0xff]
        %v438 = vld [vmem:[#allocation4 + $0x3f0] sm:$0xff]
        %v439 = vld [vmem:[#allocation4 + $0x3f8] sm:$0xff]
        %v440 = vld [vmem:[#allocation4 + $0x400] sm:$0xff]
        %v441 = vld [vmem:[#allocation4 + $0x408] sm:$0xff]
        %v442 = vld [vmem:[#allocation4 + $0x410] sm:$0xff]
        %v443 = vld [vmem:[#allocation4 + $0x418] sm:$0xff]
        %v444 = vld [vmem:[#allocation4 + $0x420] sm:$0xff]
        %v445 = vld [vmem:[#allocation4 + $0x428] sm:$0xff]
        %v446 = vld [vmem:[#allocation4 + $0x430] sm:$0xff]
        %v447 = vld [vmem:[#allocation4 + $0x438] sm:$0xff]
        %v448 = vld [vmem:[#allocation4 + $0x440] sm:$0xff]
        %v449 = vld [vmem:[#allocation4 + $0x448] sm:$0xff]
        %v450 = vld [vmem:[#allocation4 + $0x450] sm:$0xff]
        %v451 = vld [vmem:[#allocation4 + $0x458] sm:$0xff]
        %v452 = vld [vmem:[#allocation4 + $0x460] sm:$0xff]
        %v453 = vld [vmem:[#allocation4 + $0x468] sm:$0xff]
        %v454 = vld [vmem:[#allocation4 + $0x470] sm:$0xff]
        %v455 = vld [vmem:[#allocation4 + $0x478] sm:$0xff]
        %v456 = vld [vmem:[#allocation4 + $0x480] sm:$0xff]
        %v457 = vld [vmem:[#allocation4 + $0x488] sm:$0xff]
        %v458 = vld [vmem:[#allocation4 + $0x490] sm:$0xff]
        %v459 = vld [vmem:[#allocation4 + $0x498] sm:$0xff]
        %v460 = vld [vmem:[#allocation4 + $0x4a0] sm:$0xff]
        %v461 = vld [vmem:[#allocation4 + $0x4a8] sm:$0xff]
        %v462 = vld [vmem:[#allocation4 + $0x4b0] sm:$0xff]
        %v463 = vld [vmem:[#allocation4 + $0x4b8] sm:$0xff]
        %v464 = vld [vmem:[#allocation4 + $0x4c0] sm:$0xff]
        %v465 = vld [vmem:[#allocation4 + $0x4c8] sm:$0xff]
        %v466 = vld [vmem:[#allocation4 + $0x4d0] sm:$0xff]
        %v467 = vld [vmem:[#allocation4 + $0x4d8] sm:$0xff]
        %v468 = vld [vmem:[#allocation4 + $0x4e0] sm:$0xff]
        %v469 = vld [vmem:[#allocation4 + $0x4e8] sm:$0xff]
        %v470 = vld [vmem:[#allocation4 + $0x4f0] sm:$0xff]
        %v471 = vld [vmem:[#allocation4 + $0x4f8] sm:$0xff]
        %v472 = vld [vmem:[#allocation4 + $0x500] sm:$0xff]
        %v473 = vld [vmem:[#allocation4 + $0x508] sm:$0xff]
        %v474 = vld [vmem:[#allocation4 + $0x510] sm:$0xff]
        %v475 = vld [vmem:[#allocation4 + $0x518] sm:$0xff]
        %v476 = vld [vmem:[#allocation4 + $0x520] sm:$0xff]
        %v477 = vld [vmem:[#allocation4 + $0x528] sm:$0xff]
        %v478 = vld [vmem:[#allocation4 + $0x530] sm:$0xff]
        %v479 = vld [vmem:[#allocation4 + $0x538] sm:$0xff]
        %v480 = vld [vmem:[#allocation4 + $0x540] sm:$0xff]
        %v481 = vld [vmem:[#allocation4 + $0x548] sm:$0xff]
        %v482 = vld [vmem:[#allocation4 + $0x550] sm:$0xff]
        %v483 = vld [vmem:[#allocation4 + $0x558] sm:$0xff]
        %v484 = vld [vmem:[#allocation4 + $0x560] sm:$0xff]
        %v485 = vld [vmem:[#allocation4 + $0x568] sm:$0xff]
        %v486 = vld [vmem:[#allocation4 + $0x570] sm:$0xff]
        %v487 = vld [vmem:[#allocation4 + $0x578] sm:$0xff]
        %v488 = vld [vmem:[#allocation4 + $0x580] sm:$0xff]
        %v489 = vld [vmem:[#allocation4 + $0x588] sm:$0xff]
        %v490 = vld [vmem:[#allocation4 + $0x590] sm:$0xff]
        %v491 = vld [vmem:[#allocation4 + $0x598] sm:$0xff]
        %v492 = vld [vmem:[#allocation4 + $0x5a0] sm:$0xff]
        %v493 = vld [vmem:[#allocation4 + $0x5a8] sm:$0xff]
        %v494 = vld [vmem:[#allocation4 + $0x5b0] sm:$0xff]
        %v495 = vld [vmem:[#allocation4 + $0x5b8] sm:$0xff]
        %v496 = vld [vmem:[#allocation4 + $0x5c0] sm:$0xff]
        %v497 = vld [vmem:[#allocation4 + $0x5c8] sm:$0xff]
        %v498 = vld [vmem:[#allocation4 + $0x5d0] sm:$0xff]
        %v499 = vld [vmem:[#allocation4 + $0x5d8] sm:$0xff]
        %v500 = vld [vmem:[#allocation4 + $0x5e0] sm:$0xff]
        %v501 = vld [vmem:[#allocation4 + $0x5e8] sm:$0xff]
        %v502 = vld [vmem:[#allocation4 + $0x5f0] sm:$0xff]
        %v503 = vld [vmem:[#allocation4 + $0x5f8] sm:$0xff]
        %v504 = vld [vmem:[#allocation4 + $0x600] sm:$0xff]
        %v505 = vld [vmem:[#allocation4 + $0x608] sm:$0xff]
        %v506 = vld [vmem:[#allocation4 + $0x610] sm:$0xff]
        %v507 = vld [vmem:[#allocation4 + $0x618] sm:$0xff]
        %v508 = vld [vmem:[#allocation6] sm:$0xf]
        %v510 = vlaneseq
        %v511 = vshrl.u32 %v510, 7
        %v512 = vsub.s32 0, %v511
        %v513 = vrot.slane %v508, %v512
        %v514 = vlaneseq
        %v515 = vshrl.u32 %v514, 7
        %v516 = vsub.s32 1, %v515
        %v517 = vrot.slane %v508, %v516
        %v518 = vlaneseq
        %v519 = vshrl.u32 %v518, 7
        %v520 = vsub.s32 2, %v519
        %v521 = vrot.slane %v508, %v520
        %v522 = vlaneseq
        %v523 = vshrl.u32 %v522, 7
        %v524 = vsub.s32 3, %v523
        %v525 = vrot.slane %v508, %v524
        %v726 = vunpack.c.l.b16 %v312
        %v727 = vunpack.c.h.b16 %v312
        %v728 = vunpack.c.l.b16 %v313
        %v729 = vunpack.c.h.b16 %v313
        %v730 = vunpack.c.l.b16 %v314
        %v731 = vunpack.c.h.b16 %v314
        %v732 = vunpack.c.l.b16 %v315
        %v733 = vunpack.c.h.b16 %v315
        %v734 = vunpack.c.l.b16 %v316
        %v735 = vunpack.c.h.b16 %v316
        %v736 = vunpack.c.l.b16 %v317
        %v737 = vunpack.c.h.b16 %v317
        %v738 = vunpack.c.l.b16 %v318
        %v739 = vunpack.c.h.b16 %v318
        %v740 = vunpack.c.l.b16 %v319
        %v741 = vunpack.c.h.b16 %v319
        %v742 = vunpack.c.l.b16 %v320
        %v743 = vunpack.c.h.b16 %v320
        %v744 = vunpack.c.l.b16 %v321
        %v745 = vunpack.c.h.b16 %v321
        %v746 = vunpack.c.l.b16 %v322
        %v747 = vunpack.c.h.b16 %v322
        %v748 = vunpack.c.l.b16 %v323
        %v749 = vunpack.c.h.b16 %v323
        %v750 = vunpack.c.l.b16 %v324
        %v751 = vunpack.c.h.b16 %v324
        %v752 = vunpack.c.l.b16 %v325
        %v753 = vunpack.c.h.b16 %v325
        %v754 = vunpack.c.l.b16 %v326
        %v755 = vunpack.c.h.b16 %v326
        %v756 = vunpack.c.l.b16 %v327
        %v757 = vunpack.c.h.b16 %v327
        %v758 = vunpack.c.l.b16 %v328
        %v759 = vunpack.c.h.b16 %v328
        %v760 = vunpack.c.l.b16 %v329
        %v761 = vunpack.c.h.b16 %v329
        %v762 = vunpack.c.l.b16 %v330
        %v763 = vunpack.c.h.b16 %v330
        %v764 = vunpack.c.l.b16 %v331
        %v765 = vunpack.c.h.b16 %v331
        %v766 = vunpack.c.l.b16 %v332
        %v767 = vunpack.c.h.b16 %v332
        %v768 = vunpack.c.l.b16 %v333
        %v769 = vunpack.c.h.b16 %v333
        %v770 = vunpack.c.l.b16 %v334
        %v771 = vunpack.c.h.b16 %v334
        %v772 = vunpack.c.l.b16 %v335
        %v773 = vunpack.c.h.b16 %v335
        %v774 = vunpack.c.l.b16 %v336
        %v775 = vunpack.c.h.b16 %v336
        %v776 = vunpack.c.l.b16 %v337
        %v777 = vunpack.c.h.b16 %v337
        %v778 = vunpack.c.l.b16 %v338
        %v779 = vunpack.c.h.b16 %v338
        %v780 = vunpack.c.l.b16 %v339
        %v781 = vunpack.c.h.b16 %v339
        %v782 = vunpack.c.l.b16 %v340
        %v783 = vunpack.c.h.b16 %v340
        %v784 = vunpack.c.l.b16 %v341
        %v785 = vunpack.c.h.b16 %v341
        %v786 = vunpack.c.l.b16 %v342
        %v787 = vunpack.c.h.b16 %v342
        %v788 = vunpack.c.l.b16 %v343
        %v789 = vunpack.c.h.b16 %v343
        %v790 = vunpack.c.l.b16 %v344
        %v791 = vunpack.c.h.b16 %v344
        %v792 = vunpack.c.l.b16 %v345
        %v793 = vunpack.c.h.b16 %v345
        %v794 = vunpack.c.l.b16 %v346
        %v795 = vunpack.c.h.b16 %v346
        %v796 = vunpack.c.l.b16 %v347
        %v797 = vunpack.c.h.b16 %v347
        %v798 = vunpack.c.l.b16 %v348
        %v799 = vunpack.c.h.b16 %v348
        %v800 = vunpack.c.l.b16 %v349
        %v801 = vunpack.c.h.b16 %v349
        %v802 = vunpack.c.l.b16 %v350
        %v803 = vunpack.c.h.b16 %v350
        %v804 = vunpack.c.l.b16 %v351
        %v805 = vunpack.c.h.b16 %v351
        %v806 = vunpack.c.l.b16 %v352
        %v807 = vunpack.c.h.b16 %v352
        %v808 = vunpack.c.l.b16 %v353
        %v809 = vunpack.c.h.b16 %v353
        %v810 = vunpack.c.l.b16 %v354
        %v811 = vunpack.c.h.b16 %v354
        %v812 = vunpack.c.l.b16 %v355
        %v813 = vunpack.c.h.b16 %v355
        %v814 = vunpack.c.l.b16 %v356
        %v815 = vunpack.c.h.b16 %v356
        %v816 = vunpack.c.l.b16 %v357
        %v817 = vunpack.c.h.b16 %v357
        %v818 = vunpack.c.l.b16 %v358
        %v819 = vunpack.c.h.b16 %v358
        %v820 = vunpack.c.l.b16 %v359
        %v821 = vunpack.c.h.b16 %v359
        %v822 = vunpack.c.l.b16 %v360
        %v823 = vunpack.c.h.b16 %v360
        %v824 = vunpack.c.l.b16 %v361
        %v825 = vunpack.c.h.b16 %v361
        %v826 = vunpack.c.l.b16 %v362
        %v827 = vunpack.c.h.b16 %v362
        %v828 = vunpack.c.l.b16 %v363
        %v829 = vunpack.c.h.b16 %v363
        %v830 = vunpack.c.l.b16 %v364
        %v831 = vunpack.c.h.b16 %v364
        %v832 = vunpack.c.l.b16 %v365
        %v833 = vunpack.c.h.b16 %v365
        %v834 = vunpack.c.l.b16 %v366
        %v835 = vunpack.c.h.b16 %v366
        %v836 = vunpack.c.l.b16 %v367
        %v837 = vunpack.c.h.b16 %v367
        %v838 = vunpack.c.l.b16 %v368
        %v839 = vunpack.c.h.b16 %v368
        %v840 = vunpack.c.l.b16 %v369
        %v841 = vunpack.c.h.b16 %v369
        %v842 = vunpack.c.l.b16 %v370
        %v843 = vunpack.c.h.b16 %v370
        %v844 = vunpack.c.l.b16 %v371
        %v845 = vunpack.c.h.b16 %v371
        %v846 = vunpack.c.l.b16 %v372
        %v847 = vunpack.c.h.b16 %v372
        %v848 = vunpack.c.l.b16 %v373
        %v849 = vunpack.c.h.b16 %v373
        %v850 = vunpack.c.l.b16 %v374
        %v851 = vunpack.c.h.b16 %v374
        %v852 = vunpack.c.l.b16 %v375
        %v853 = vunpack.c.h.b16 %v375
        %v854 = vunpack.c.l.b16 %v376
        %v855 = vunpack.c.h.b16 %v376
        %v856 = vunpack.c.l.b16 %v377
        %v857 = vunpack.c.h.b16 %v377
        %v858 = vunpack.c.l.b16 %v378
        %v859 = vunpack.c.h.b16 %v378
        %v860 = vunpack.c.l.b16 %v379
        %v861 = vunpack.c.h.b16 %v379
        %v862 = vunpack.c.l.b16 %v380
        %v863 = vunpack.c.h.b16 %v380
        %v864 = vunpack.c.l.b16 %v381
        %v865 = vunpack.c.h.b16 %v381
        %v866 = vunpack.c.l.b16 %v382
        %v867 = vunpack.c.h.b16 %v382
        %v868 = vunpack.c.l.b16 %v383
        %v869 = vunpack.c.h.b16 %v383
        %v870 = vunpack.c.l.b16 %v384
        %v871 = vunpack.c.h.b16 %v384
        %v872 = vunpack.c.l.b16 %v385
        %v873 = vunpack.c.h.b16 %v385
        %v874 = vunpack.c.l.b16 %v386
        %v875 = vunpack.c.h.b16 %v386
        %v876 = vunpack.c.l.b16 %v387
        %v877 = vunpack.c.h.b16 %v387
        %v878 = vunpack.c.l.b16 %v388
        %v879 = vunpack.c.h.b16 %v388
        %v880 = vunpack.c.l.b16 %v389
        %v881 = vunpack.c.h.b16 %v389
        %v882 = vunpack.c.l.b16 %v390
        %v883 = vunpack.c.h.b16 %v390
        %v884 = vunpack.c.l.b16 %v391
        %v885 = vunpack.c.h.b16 %v391
        %v886 = vunpack.c.l.b16 %v392
        %v887 = vunpack.c.h.b16 %v392
        %v888 = vunpack.c.l.b16 %v393
        %v889 = vunpack.c.h.b16 %v393
        %v890 = vunpack.c.l.b16 %v394
        %v891 = vunpack.c.h.b16 %v394
        %v892 = vunpack.c.l.b16 %v395
        %v893 = vunpack.c.h.b16 %v395
        %v894 = vunpack.c.l.b16 %v396
        %v895 = vunpack.c.h.b16 %v396
        %v896 = vunpack.c.l.b16 %v397
        %v897 = vunpack.c.h.b16 %v397
        %v898 = vunpack.c.l.b16 %v398
        %v899 = vunpack.c.h.b16 %v398
        %v900 = vunpack.c.l.b16 %v399
        %v901 = vunpack.c.h.b16 %v399
        %v902 = vunpack.c.l.b16 %v400
        %v903 = vunpack.c.h.b16 %v400
        %v904 = vunpack.c.l.b16 %v401
        %v905 = vunpack.c.h.b16 %v401
        %v906 = vunpack.c.l.b16 %v402
        %v907 = vunpack.c.h.b16 %v402
        %v908 = vunpack.c.l.b16 %v403
        %v909 = vunpack.c.h.b16 %v403
        %v910 = vunpack.c.l.b16 %v404
        %v911 = vunpack.c.h.b16 %v404
        %v912 = vunpack.c.l.b16 %v405
        %v913 = vunpack.c.h.b16 %v405
        %v914 = vunpack.c.l.b16 %v406
        %v915 = vunpack.c.h.b16 %v406
        %v916 = vunpack.c.l.b16 %v407
        %v917 = vunpack.c.h.b16 %v407
        %v918 = vunpack.c.l.b16 %v408
        %v919 = vunpack.c.h.b16 %v408
        %v920 = vunpack.c.l.b16 %v409
        %v921 = vunpack.c.h.b16 %v409
        %v922 = vunpack.c.l.b16 %v410
        %v923 = vunpack.c.h.b16 %v410
        %v924 = vunpack.c.l.b16 %v411
        %v925 = vunpack.c.h.b16 %v411
        %v926 = vunpack.c.l.b16 %v412
        %v927 = vunpack.c.h.b16 %v412
        %v928 = vunpack.c.l.b16 %v413
        %v929 = vunpack.c.h.b16 %v413
        %v930 = vunpack.c.l.b16 %v414
        %v931 = vunpack.c.h.b16 %v414
        %v932 = vunpack.c.l.b16 %v415
        %v933 = vunpack.c.h.b16 %v415
        %v934 = vunpack.c.l.b16 %v416
        %v935 = vunpack.c.h.b16 %v416
        %v936 = vunpack.c.l.b16 %v417
        %v937 = vunpack.c.h.b16 %v417
        %v938 = vunpack.c.l.b16 %v418
        %v939 = vunpack.c.h.b16 %v418
        %v940 = vunpack.c.l.b16 %v419
        %v941 = vunpack.c.h.b16 %v419
        %v942 = vunpack.c.l.b16 %v420
        %v943 = vunpack.c.h.b16 %v420
        %v944 = vunpack.c.l.b16 %v421
        %v945 = vunpack.c.h.b16 %v421
        %v946 = vunpack.c.l.b16 %v422
        %v947 = vunpack.c.h.b16 %v422
        %v948 = vunpack.c.l.b16 %v423
        %v949 = vunpack.c.h.b16 %v423
        %v950 = vunpack.c.l.b16 %v424
        %v951 = vunpack.c.h.b16 %v424
        %v952 = vunpack.c.l.b16 %v425
        %v953 = vunpack.c.h.b16 %v425
        %v954 = vunpack.c.l.b16 %v426
        %v955 = vunpack.c.h.b16 %v426
        %v956 = vunpack.c.l.b16 %v427
        %v957 = vunpack.c.h.b16 %v427
        %v958 = vunpack.c.l.b16 %v428
        %v959 = vunpack.c.h.b16 %v428
        %v960 = vunpack.c.l.b16 %v429
        %v961 = vunpack.c.h.b16 %v429
        %v962 = vunpack.c.l.b16 %v430
        %v963 = vunpack.c.h.b16 %v430
        %v964 = vunpack.c.l.b16 %v431
        %v965 = vunpack.c.h.b16 %v431
        %v966 = vunpack.c.l.b16 %v432
        %v967 = vunpack.c.h.b16 %v432
        %v968 = vunpack.c.l.b16 %v433
        %v969 = vunpack.c.h.b16 %v433
        %v970 = vunpack.c.l.b16 %v434
        %v971 = vunpack.c.h.b16 %v434
        %v972 = vunpack.c.l.b16 %v435
        %v973 = vunpack.c.h.b16 %v435
        %v974 = vunpack.c.l.b16 %v436
        %v975 = vunpack.c.h.b16 %v436
        %v976 = vunpack.c.l.b16 %v437
        %v977 = vunpack.c.h.b16 %v437
        %v978 = vunpack.c.l.b16 %v438
        %v979 = vunpack.c.h.b16 %v438
        %v980 = vunpack.c.l.b16 %v439
        %v981 = vunpack.c.h.b16 %v439
        %v982 = vunpack.c.l.b16 %v440
        %v983 = vunpack.c.h.b16 %v440
        %v984 = vunpack.c.l.b16 %v441
        %v985 = vunpack.c.h.b16 %v441
        %v986 = vunpack.c.l.b16 %v442
        %v987 = vunpack.c.h.b16 %v442
        %v988 = vunpack.c.l.b16 %v443
        %v989 = vunpack.c.h.b16 %v443
        %v990 = vunpack.c.l.b16 %v444
        %v991 = vunpack.c.h.b16 %v444
        %v992 = vunpack.c.l.b16 %v445
        %v993 = vunpack.c.h.b16 %v445
        %v994 = vunpack.c.l.b16 %v446
        %v995 = vunpack.c.h.b16 %v446
        %v996 = vunpack.c.l.b16 %v447
        %v997 = vunpack.c.h.b16 %v447
        %v998 = vunpack.c.l.b16 %v448
        %v999 = vunpack.c.h.b16 %v448
        %v1000 = vunpack.c.l.b16 %v449
        %v1001 = vunpack.c.h.b16 %v449
        %v1002 = vunpack.c.l.b16 %v450
        %v1003 = vunpack.c.h.b16 %v450
        %v1004 = vunpack.c.l.b16 %v451
        %v1005 = vunpack.c.h.b16 %v451
        %v1006 = vunpack.c.l.b16 %v452
        %v1007 = vunpack.c.h.b16 %v452
        %v1008 = vunpack.c.l.b16 %v453
        %v1009 = vunpack.c.h.b16 %v453
        %v1010 = vunpack.c.l.b16 %v454
        %v1011 = vunpack.c.h.b16 %v454
        %v1012 = vunpack.c.l.b16 %v455
        %v1013 = vunpack.c.h.b16 %v455
        %v1014 = vunpack.c.l.b16 %v456
        %v1015 = vunpack.c.h.b16 %v456
        %v1016 = vunpack.c.l.b16 %v457
        %v1017 = vunpack.c.h.b16 %v457
        %v1018 = vunpack.c.l.b16 %v458
        %v1019 = vunpack.c.h.b16 %v458
        %v1020 = vunpack.c.l.b16 %v459
        %v1021 = vunpack.c.h.b16 %v459
        %v1022 = vunpack.c.l.b16 %v460
        %v1023 = vunpack.c.h.b16 %v460
        %v1024 = vunpack.c.l.b16 %v461
        %v1025 = vunpack.c.h.b16 %v461
        %v1026 = vunpack.c.l.b16 %v462
        %v1027 = vunpack.c.h.b16 %v462
        %v1028 = vunpack.c.l.b16 %v463
        %v1029 = vunpack.c.h.b16 %v463
        %v1030 = vunpack.c.l.b16 %v464
        %v1031 = vunpack.c.h.b16 %v464
        %v1032 = vunpack.c.l.b16 %v465
        %v1033 = vunpack.c.h.b16 %v465
        %v1034 = vunpack.c.l.b16 %v466
        %v1035 = vunpack.c.h.b16 %v466
        %v1036 = vunpack.c.l.b16 %v467
        %v1037 = vunpack.c.h.b16 %v467
        %v1038 = vunpack.c.l.b16 %v468
        %v1039 = vunpack.c.h.b16 %v468
        %v1040 = vunpack.c.l.b16 %v469
        %v1041 = vunpack.c.h.b16 %v469
        %v1042 = vunpack.c.l.b16 %v470
        %v1043 = vunpack.c.h.b16 %v470
        %v1044 = vunpack.c.l.b16 %v471
        %v1045 = vunpack.c.h.b16 %v471
        %v1046 = vunpack.c.l.b16 %v472
        %v1047 = vunpack.c.h.b16 %v472
        %v1048 = vunpack.c.l.b16 %v473
        %v1049 = vunpack.c.h.b16 %v473
        %v1050 = vunpack.c.l.b16 %v474
        %v1051 = vunpack.c.h.b16 %v474
        %v1052 = vunpack.c.l.b16 %v475
        %v1053 = vunpack.c.h.b16 %v475
        %v1054 = vunpack.c.l.b16 %v476
        %v1055 = vunpack.c.h.b16 %v476
        %v1056 = vunpack.c.l.b16 %v477
        %v1057 = vunpack.c.h.b16 %v477
        %v1058 = vunpack.c.l.b16 %v478
        %v1059 = vunpack.c.h.b16 %v478
        %v1060 = vunpack.c.l.b16 %v479
        %v1061 = vunpack.c.h.b16 %v479
        %v1062 = vunpack.c.l.b16 %v480
        %v1063 = vunpack.c.h.b16 %v480
        %v1064 = vunpack.c.l.b16 %v481
        %v1065 = vunpack.c.h.b16 %v481
        %v1066 = vunpack.c.l.b16 %v482
        %v1067 = vunpack.c.h.b16 %v482
        %v1068 = vunpack.c.l.b16 %v483
        %v1069 = vunpack.c.h.b16 %v483
        %v1070 = vunpack.c.l.b16 %v484
        %v1071 = vunpack.c.h.b16 %v484
        %v1072 = vunpack.c.l.b16 %v485
        %v1073 = vunpack.c.h.b16 %v485
        %v1074 = vunpack.c.l.b16 %v486
        %v1075 = vunpack.c.h.b16 %v486
        %v1076 = vunpack.c.l.b16 %v487
        %v1077 = vunpack.c.h.b16 %v487
        %v1078 = vunpack.c.l.b16 %v488
        %v1079 = vunpack.c.h.b16 %v488
        %v1080 = vunpack.c.l.b16 %v489
        %v1081 = vunpack.c.h.b16 %v489
        %v1082 = vunpack.c.l.b16 %v490
        %v1083 = vunpack.c.h.b16 %v490
        %v1084 = vunpack.c.l.b16 %v491
        %v1085 = vunpack.c.h.b16 %v491
        %v1086 = vunpack.c.l.b16 %v492
        %v1087 = vunpack.c.h.b16 %v492
        %v1088 = vunpack.c.l.b16 %v493
        %v1089 = vunpack.c.h.b16 %v493
        %v1090 = vunpack.c.l.b16 %v494
        %v1091 = vunpack.c.h.b16 %v494
        %v1092 = vunpack.c.l.b16 %v495
        %v1093 = vunpack.c.h.b16 %v495
        %v1094 = vunpack.c.l.b16 %v496
        %v1095 = vunpack.c.h.b16 %v496
        %v1096 = vunpack.c.l.b16 %v497
        %v1097 = vunpack.c.h.b16 %v497
        %v1098 = vunpack.c.l.b16 %v498
        %v1099 = vunpack.c.h.b16 %v498
        %v1100 = vunpack.c.l.b16 %v499
        %v1101 = vunpack.c.h.b16 %v499
        %v1102 = vunpack.c.l.b16 %v500
        %v1103 = vunpack.c.h.b16 %v500
        %v1104 = vunpack.c.l.b16 %v501
        %v1105 = vunpack.c.h.b16 %v501
        %v1106 = vunpack.c.l.b16 %v502
        %v1107 = vunpack.c.h.b16 %v502
        %v1108 = vunpack.c.l.b16 %v503
        %v1109 = vunpack.c.h.b16 %v503
        %v1110 = vunpack.c.l.b16 %v504
        %v1111 = vunpack.c.h.b16 %v504
        %v1112 = vunpack.c.l.b16 %v505
        %v1113 = vunpack.c.h.b16 %v505
        %v1114 = vunpack.c.l.b16 %v506
        %v1115 = vunpack.c.h.b16 %v506
        %v1116 = vunpack.c.l.b16 %v507
        %v1117 = vunpack.c.h.b16 %v507
        %v1118 = vpack.c.b16 %v730, %v726
        %v1119 = vpack.c.b16 %v731, %v727
        %v1120 = vpack.c.b16 %v732, %v728
        %v1121 = vpack.c.b16 %v733, %v729
        %v1122 = vpack.c.b16 %v738, %v734
        %v1123 = vpack.c.b16 %v739, %v735
        %v1124 = vpack.c.b16 %v740, %v736
        %v1125 = vpack.c.b16 %v741, %v737
        %v1126 = vpack.c.b16 %v746, %v742
        %v1127 = vpack.c.b16 %v747, %v743
        %v1128 = vpack.c.b16 %v748, %v744
        %v1129 = vpack.c.b16 %v749, %v745
        %v1130 = vpack.c.b16 %v754, %v750
        %v1131 = vpack.c.b16 %v755, %v751
        %v1132 = vpack.c.b16 %v756, %v752
        %v1133 = vpack.c.b16 %v757, %v753
        %v1134 = vpack.c.b16 %v762, %v758
        %v1135 = vpack.c.b16 %v763, %v759
        %v1136 = vpack.c.b16 %v764, %v760
        %v1137 = vpack.c.b16 %v765, %v761
        %v1138 = vpack.c.b16 %v770, %v766
        %v1139 = vpack.c.b16 %v771, %v767
        %v1140 = vpack.c.b16 %v772, %v768
        %v1141 = vpack.c.b16 %v773, %v769
        %v1142 = vpack.c.b16 %v778, %v774
        %v1143 = vpack.c.b16 %v779, %v775
        %v1144 = vpack.c.b16 %v780, %v776
        %v1145 = vpack.c.b16 %v781, %v777
        %v1146 = vpack.c.b16 %v786, %v782
        %v1147 = vpack.c.b16 %v787, %v783
        %v1148 = vpack.c.b16 %v788, %v784
        %v1149 = vpack.c.b16 %v789, %v785
        %v1150 = vpack.c.b16 %v794, %v790
        %v1151 = vpack.c.b16 %v795, %v791
        %v1152 = vpack.c.b16 %v796, %v792
        %v1153 = vpack.c.b16 %v797, %v793
        %v1154 = vpack.c.b16 %v802, %v798
        %v1155 = vpack.c.b16 %v803, %v799
        %v1156 = vpack.c.b16 %v804, %v800
        %v1157 = vpack.c.b16 %v805, %v801
        %v1158 = vpack.c.b16 %v810, %v806
        %v1159 = vpack.c.b16 %v811, %v807
        %v1160 = vpack.c.b16 %v812, %v808
        %v1161 = vpack.c.b16 %v813, %v809
        %v1162 = vpack.c.b16 %v818, %v814
        %v1163 = vpack.c.b16 %v819, %v815
        %v1164 = vpack.c.b16 %v820, %v816
        %v1165 = vpack.c.b16 %v821, %v817
        %v1166 = vpack.c.b16 %v826, %v822
        %v1167 = vpack.c.b16 %v827, %v823
        %v1168 = vpack.c.b16 %v828, %v824
        %v1169 = vpack.c.b16 %v829, %v825
        %v1170 = vpack.c.b16 %v834, %v830
        %v1171 = vpack.c.b16 %v835, %v831
        %v1172 = vpack.c.b16 %v836, %v832
        %v1173 = vpack.c.b16 %v837, %v833
        %v1174 = vpack.c.b16 %v842, %v838
        %v1175 = vpack.c.b16 %v843, %v839
        %v1176 = vpack.c.b16 %v844, %v840
        %v1177 = vpack.c.b16 %v845, %v841
        %v1178 = vpack.c.b16 %v850, %v846
        %v1179 = vpack.c.b16 %v851, %v847
        %v1180 = vpack.c.b16 %v852, %v848
        %v1181 = vpack.c.b16 %v853, %v849
        %v1182 = vpack.c.b16 %v858, %v854
        %v1183 = vpack.c.b16 %v859, %v855
        %v1184 = vpack.c.b16 %v860, %v856
        %v1185 = vpack.c.b16 %v861, %v857
        %v1186 = vpack.c.b16 %v866, %v862
        %v1187 = vpack.c.b16 %v867, %v863
        %v1188 = vpack.c.b16 %v868, %v864
        %v1189 = vpack.c.b16 %v869, %v865
        %v1190 = vpack.c.b16 %v874, %v870
        %v1191 = vpack.c.b16 %v875, %v871
        %v1192 = vpack.c.b16 %v876, %v872
        %v1193 = vpack.c.b16 %v877, %v873
        %v1194 = vpack.c.b16 %v882, %v878
        %v1195 = vpack.c.b16 %v883, %v879
        %v1196 = vpack.c.b16 %v884, %v880
        %v1197 = vpack.c.b16 %v885, %v881
        %v1198 = vpack.c.b16 %v890, %v886
        %v1199 = vpack.c.b16 %v891, %v887
        %v1200 = vpack.c.b16 %v892, %v888
        %v1201 = vpack.c.b16 %v893, %v889
        %v1202 = vpack.c.b16 %v898, %v894
        %v1203 = vpack.c.b16 %v899, %v895
        %v1204 = vpack.c.b16 %v900, %v896
        %v1205 = vpack.c.b16 %v901, %v897
        %v1206 = vpack.c.b16 %v906, %v902
        %v1207 = vpack.c.b16 %v907, %v903
        %v1208 = vpack.c.b16 %v908, %v904
        %v1209 = vpack.c.b16 %v909, %v905
        %v1210 = vpack.c.b16 %v914, %v910
        %v1211 = vpack.c.b16 %v915, %v911
        %v1212 = vpack.c.b16 %v916, %v912
        %v1213 = vpack.c.b16 %v917, %v913
        %v1214 = vpack.c.b16 %v922, %v918
        %v1215 = vpack.c.b16 %v923, %v919
        %v1216 = vpack.c.b16 %v924, %v920
        %v1217 = vpack.c.b16 %v925, %v921
        %v1218 = vpack.c.b16 %v930, %v926
        %v1219 = vpack.c.b16 %v931, %v927
        %v1220 = vpack.c.b16 %v932, %v928
        %v1221 = vpack.c.b16 %v933, %v929
        %v1222 = vpack.c.b16 %v938, %v934
        %v1223 = vpack.c.b16 %v939, %v935
        %v1224 = vpack.c.b16 %v940, %v936
        %v1225 = vpack.c.b16 %v941, %v937
        %v1226 = vpack.c.b16 %v946, %v942
        %v1227 = vpack.c.b16 %v947, %v943
        %v1228 = vpack.c.b16 %v948, %v944
        %v1229 = vpack.c.b16 %v949, %v945
        %v1230 = vpack.c.b16 %v954, %v950
        %v1231 = vpack.c.b16 %v955, %v951
        %v1232 = vpack.c.b16 %v956, %v952
        %v1233 = vpack.c.b16 %v957, %v953
        %v1234 = vpack.c.b16 %v962, %v958
        %v1235 = vpack.c.b16 %v963, %v959
        %v1236 = vpack.c.b16 %v964, %v960
        %v1237 = vpack.c.b16 %v965, %v961
        %v1238 = vpack.c.b16 %v970, %v966
        %v1239 = vpack.c.b16 %v971, %v967
        %v1240 = vpack.c.b16 %v972, %v968
        %v1241 = vpack.c.b16 %v973, %v969
        %v1242 = vpack.c.b16 %v978, %v974
        %v1243 = vpack.c.b16 %v979, %v975
        %v1244 = vpack.c.b16 %v980, %v976
        %v1245 = vpack.c.b16 %v981, %v977
        %v1246 = vpack.c.b16 %v986, %v982
        %v1247 = vpack.c.b16 %v987, %v983
        %v1248 = vpack.c.b16 %v988, %v984
        %v1249 = vpack.c.b16 %v989, %v985
        %v1250 = vpack.c.b16 %v994, %v990
        %v1251 = vpack.c.b16 %v995, %v991
        %v1252 = vpack.c.b16 %v996, %v992
        %v1253 = vpack.c.b16 %v997, %v993
        %v1254 = vpack.c.b16 %v1002, %v998
        %v1255 = vpack.c.b16 %v1003, %v999
        %v1256 = vpack.c.b16 %v1004, %v1000
        %v1257 = vpack.c.b16 %v1005, %v1001
        %v1258 = vpack.c.b16 %v1010, %v1006
        %v1259 = vpack.c.b16 %v1011, %v1007
        %v1260 = vpack.c.b16 %v1012, %v1008
        %v1261 = vpack.c.b16 %v1013, %v1009
        %v1262 = vpack.c.b16 %v1018, %v1014
        %v1263 = vpack.c.b16 %v1019, %v1015
        %v1264 = vpack.c.b16 %v1020, %v1016
        %v1265 = vpack.c.b16 %v1021, %v1017
        %v1266 = vpack.c.b16 %v1026, %v1022
        %v1267 = vpack.c.b16 %v1027, %v1023
        %v1268 = vpack.c.b16 %v1028, %v1024
        %v1269 = vpack.c.b16 %v1029, %v1025
        %v1270 = vpack.c.b16 %v1034, %v1030
        %v1271 = vpack.c.b16 %v1035, %v1031
        %v1272 = vpack.c.b16 %v1036, %v1032
        %v1273 = vpack.c.b16 %v1037, %v1033
        %v1274 = vpack.c.b16 %v1042, %v1038
        %v1275 = vpack.c.b16 %v1043, %v1039
        %v1276 = vpack.c.b16 %v1044, %v1040
        %v1277 = vpack.c.b16 %v1045, %v1041
        %v1278 = vpack.c.b16 %v1050, %v1046
        %v1279 = vpack.c.b16 %v1051, %v1047
        %v1280 = vpack.c.b16 %v1052, %v1048
        %v1281 = vpack.c.b16 %v1053, %v1049
        %v1282 = vpack.c.b16 %v1058, %v1054
        %v1283 = vpack.c.b16 %v1059, %v1055
        %v1284 = vpack.c.b16 %v1060, %v1056
        %v1285 = vpack.c.b16 %v1061, %v1057
        %v1286 = vpack.c.b16 %v1066, %v1062
        %v1287 = vpack.c.b16 %v1067, %v1063
        %v1288 = vpack.c.b16 %v1068, %v1064
        %v1289 = vpack.c.b16 %v1069, %v1065
        %v1290 = vpack.c.b16 %v1074, %v1070
        %v1291 = vpack.c.b16 %v1075, %v1071
        %v1292 = vpack.c.b16 %v1076, %v1072
        %v1293 = vpack.c.b16 %v1077, %v1073
        %v1294 = vpack.c.b16 %v1082, %v1078
        %v1295 = vpack.c.b16 %v1083, %v1079
        %v1296 = vpack.c.b16 %v1084, %v1080
        %v1297 = vpack.c.b16 %v1085, %v1081
        %v1298 = vpack.c.b16 %v1090, %v1086
        %v1299 = vpack.c.b16 %v1091, %v1087
        %v1300 = vpack.c.b16 %v1092, %v1088
        %v1301 = vpack.c.b16 %v1093, %v1089
        %v1302 = vpack.c.b16 %v1098, %v1094
        %v1303 = vpack.c.b16 %v1099, %v1095
        %v1304 = vpack.c.b16 %v1100, %v1096
        %v1305 = vpack.c.b16 %v1101, %v1097
        %v1306 = vpack.c.b16 %v1106, %v1102
        %v1307 = vpack.c.b16 %v1107, %v1103
        %v1308 = vpack.c.b16 %v1108, %v1104
        %v1309 = vpack.c.b16 %v1109, %v1105
        %v1310 = vpack.c.b16 %v1114, %v1110
        %v1311 = vpack.c.b16 %v1115, %v1111
        %v1312 = vpack.c.b16 %v1116, %v1112
        %v1313 = vpack.c.b16 %v1117, %v1113
        %vm1510 = vcmask 130048
        %v1512 = vsel %vm1510, %v311, 0
        %1514 = vmatprep.subr.bf16.mxu0 %v1147
        %1515 = vmatpush1.bf16.msra.mxu0 %v1146
        %1516 = vmatprep.subr.bf16.mxu0 %v1143
        %1517 = vmatpush1.bf16.msra.mxu0 %v1142
        %1518 = vmatprep.subr.bf16.mxu0 %v1139
        %1519 = vmatpush1.bf16.msra.mxu0 %v1138
        %1520 = vmatprep.subr.bf16.mxu0 %v1135
        %1521 = vmatpush1.bf16.msra.mxu0 %v1134
        %1522 = vmatprep.subr.bf16.mxu0 %v1131
        %1523 = vmatpush1.bf16.msra.mxu0 %v1130
        %1524 = vmatprep.subr.bf16.mxu0 %v1127
        %1525 = vmatpush1.bf16.msra.mxu0 %v1126
        %1526 = vmatprep.subr.bf16.mxu0 %v1123
        %1527 = vmatpush1.bf16.msra.mxu0 %v1122
        %1528 = vmatprep.subr.bf16.mxu0 %v1119
        %1529 = vmatpush1.bf16.msra.mxu0 %v1118
        %1530 = vmatprep.subr.bf16.mxu0 %v1179
        %1531 = vmatpush2.bf16.msra.mxu0 %v1178
        %1532 = vmatprep.subr.bf16.mxu0 %v1175
        %1533 = vmatpush2.bf16.msra.mxu0 %v1174
        %1534 = vmatprep.subr.bf16.mxu0 %v1171
        %1535 = vmatpush2.bf16.msra.mxu0 %v1170
        %1536 = vmatprep.subr.bf16.mxu0 %v1167
        %1537 = vmatpush2.bf16.msra.mxu0 %v1166
        %1538 = vmatprep.subr.bf16.mxu0 %v1163
        %1539 = vmatpush2.bf16.msra.mxu0 %v1162
        %1540 = vmatprep.subr.bf16.mxu0 %v1159
        %1541 = vmatpush2.bf16.msra.mxu0 %v1158
        %1542 = vmatprep.subr.bf16.mxu0 %v1155
        %1543 = vmatpush2.bf16.msra.mxu0 %v1154
        %1544 = vmatprep.subr.bf16.mxu0 %v1151
        %1545 = vmatpush2.bf16.msra.mxu0 %v1150
        %1546 = vmatprep.mubr.bf16.mxu0 %v306
        %1547 = vmatmul.mubr.bf16.gmra.mxu0 %v305
        %v1548 = vpop.f32.mrf.mxu0
        %v1549 = vadd.f32 %v513, %v1548
        %v1550 = vpop.f32.mrf.mxu0
        %v1551 = vadd.f32 %v517, %v1550
        %v1552 = vpop.f32.mrf.mxu0
        %v1553 = vadd.f32 %v513, %v1552
        %v1554 = vpop.f32.mrf.mxu0
        %v1555 = vadd.f32 %v517, %v1554
        %1556 = vdwg.mxu0
        %1557 = vmatprep.subr.bf16.mxu0 %v1211
        %1558 = vmatpush1.bf16.msra.mxu0 %v1210
        %1559 = vmatprep.subr.bf16.mxu0 %v1207
        %1560 = vmatpush1.bf16.msra.mxu0 %v1206
        %1561 = vmatprep.subr.bf16.mxu0 %v1203
        %1562 = vmatpush1.bf16.msra.mxu0 %v1202
        %1563 = vmatprep.subr.bf16.mxu0 %v1199
        %1564 = vmatpush1.bf16.msra.mxu0 %v1198
        %1565 = vmatprep.subr.bf16.mxu0 %v1195
        %1566 = vmatpush1.bf16.msra.mxu0 %v1194
        %1567 = vmatprep.subr.bf16.mxu0 %v1191
        %1568 = vmatpush1.bf16.msra.mxu0 %v1190
        %1569 = vmatprep.subr.bf16.mxu0 %v1187
        %1570 = vmatpush1.bf16.msra.mxu0 %v1186
        %1571 = vmatprep.subr.bf16.mxu0 %v1183
        %1572 = vmatpush1.bf16.msra.mxu0 %v1182
        %1573 = vmatprep.subr.bf16.mxu0 %v1243
        %1574 = vmatpush2.bf16.msra.mxu0 %v1242
        %1575 = vmatprep.subr.bf16.mxu0 %v1239
        %1576 = vmatpush2.bf16.msra.mxu0 %v1238
        %1577 = vmatprep.subr.bf16.mxu0 %v1235
        %1578 = vmatpush2.bf16.msra.mxu0 %v1234
        %1579 = vmatprep.subr.bf16.mxu0 %v1231
        %1580 = vmatpush2.bf16.msra.mxu0 %v1230
        %1581 = vmatprep.subr.bf16.mxu0 %v1227
        %1582 = vmatpush2.bf16.msra.mxu0 %v1226
        %1583 = vmatprep.subr.bf16.mxu0 %v1223
        %1584 = vmatpush2.bf16.msra.mxu0 %v1222
        %1585 = vmatprep.subr.bf16.mxu0 %v1219
        %1586 = vmatpush2.bf16.msra.mxu0 %v1218
        %1587 = vmatprep.subr.bf16.mxu0 %v1215
        %1588 = vmatpush2.bf16.msra.mxu0 %v1214
        %1589 = vmatprep.mubr.bf16.mxu0 %v308
        %1590 = vmatmul.mubr.bf16.gmra.mxu0 %v307
        %v1591 = vpop.f32.mrf.mxu0
        %v1592 = vadd.f32 %v1549, %v1591
        %v1593 = vpop.f32.mrf.mxu0
        %v1594 = vadd.f32 %v1551, %v1593
        %v1595 = vpop.f32.mrf.mxu0
        %v1596 = vadd.f32 %v1553, %v1595
        %v1597 = vpop.f32.mrf.mxu0
        %v1598 = vadd.f32 %v1555, %v1597
        %1599 = vdwg.mxu0
        %1600 = vmatprep.subr.bf16.mxu0 %v1275
        %1601 = vmatpush1.bf16.msra.mxu0 %v1274
        %1602 = vmatprep.subr.bf16.mxu0 %v1271
        %1603 = vmatpush1.bf16.msra.mxu0 %v1270
        %1604 = vmatprep.subr.bf16.mxu0 %v1267
        %1605 = vmatpush1.bf16.msra.mxu0 %v1266
        %1606 = vmatprep.subr.bf16.mxu0 %v1263
        %1607 = vmatpush1.bf16.msra.mxu0 %v1262
        %1608 = vmatprep.subr.bf16.mxu0 %v1259
        %1609 = vmatpush1.bf16.msra.mxu0 %v1258
        %1610 = vmatprep.subr.bf16.mxu0 %v1255
        %1611 = vmatpush1.bf16.msra.mxu0 %v1254
        %1612 = vmatprep.subr.bf16.mxu0 %v1251
        %1613 = vmatpush1.bf16.msra.mxu0 %v1250
        %1614 = vmatprep.subr.bf16.mxu0 %v1247
        %1615 = vmatpush1.bf16.msra.mxu0 %v1246
        %1616 = vmatprep.subr.bf16.mxu0 %v1307
        %1617 = vmatpush2.bf16.msra.mxu0 %v1306
        %1618 = vmatprep.subr.bf16.mxu0 %v1303
        %1619 = vmatpush2.bf16.msra.mxu0 %v1302
        %1620 = vmatprep.subr.bf16.mxu0 %v1299
        %1621 = vmatpush2.bf16.msra.mxu0 %v1298
        %1622 = vmatprep.subr.bf16.mxu0 %v1295
        %1623 = vmatpush2.bf16.msra.mxu0 %v1294
        %1624 = vmatprep.subr.bf16.mxu0 %v1291
        %1625 = vmatpush2.bf16.msra.mxu0 %v1290
        %1626 = vmatprep.subr.bf16.mxu0 %v1287
        %1627 = vmatpush2.bf16.msra.mxu0 %v1286
        %1628 = vmatprep.subr.bf16.mxu0 %v1283
        %1629 = vmatpush2.bf16.msra.mxu0 %v1282
        %1630 = vmatprep.subr.bf16.mxu0 %v1279
        %1631 = vmatpush2.bf16.msra.mxu0 %v1278
        %1632 = vmatprep.mubr.bf16.mxu0 %v310
        %1633 = vmatmul.mubr.bf16.gmra.mxu0 %v309
        %v1634 = vpop.f32.mrf.mxu0
        %v1635 = vadd.f32 %v1592, %v1634
        %v1636 = vpop.f32.mrf.mxu0
        %v1637 = vadd.f32 %v1594, %v1636
        %v1638 = vpop.f32.mrf.mxu0
        %v1639 = vadd.f32 %v1596, %v1638
        %v1640 = vpop.f32.mrf.mxu0
        %v1641 = vadd.f32 %v1598, %v1640
        %1642 = vdwg.mxu0
        %1643 = vmatprep.subr.bf16.mxu0 0
        %1644 = vmatpush1.bf16.msra.mxu0 0
        %1645 = vmatprep.subr.bf16.mxu0 0
        %1646 = vmatpush1.bf16.msra.mxu0 0
        %1647 = vmatprep.subr.bf16.mxu0 0
        %1648 = vmatpush1.bf16.msra.mxu0 0
        %1649 = vmatprep.subr.bf16.mxu0 0
        %1650 = vmatpush1.bf16.msra.mxu0 0
        %1651 = vmatprep.subr.bf16.mxu0 0
        %1652 = vmatpush1.bf16.msra.mxu0 0
        %1653 = vmatprep.subr.bf16.mxu0 0
        %1654 = vmatpush1.bf16.msra.mxu0 0
        %1655 = vmatprep.subr.bf16.mxu0 0
        %1656 = vmatpush1.bf16.msra.mxu0 0
        %1657 = vmatprep.subr.bf16.mxu0 %v1311
        %1658 = vmatpush1.bf16.msra.mxu0 %v1310
        %1659 = vmatprep.subr.bf16.mxu0 0
        %1660 = vmatpush2.bf16.msra.mxu0 0
        %1661 = vmatprep.subr.bf16.mxu0 0
        %1662 = vmatpush2.bf16.msra.mxu0 0
        %1663 = vmatprep.subr.bf16.mxu0 0
        %1664 = vmatpush2.bf16.msra.mxu0 0
        %1665 = vmatprep.subr.bf16.mxu0 0
        %1666 = vmatpush2.bf16.msra.mxu0 0
        %1667 = vmatprep.subr.bf16.mxu0 0
        %1668 = vmatpush2.bf16.msra.mxu0 0
        %1669 = vmatprep.subr.bf16.mxu0 0
        %1670 = vmatpush2.bf16.msra.mxu0 0
        %1671 = vmatprep.subr.bf16.mxu0 0
        %1672 = vmatpush2.bf16.msra.mxu0 0
        %1673 = vmatprep.subr.bf16.mxu0 0
        %1674 = vmatpush2.bf16.msra.mxu0 0
        %1675 = vmatprep.mubr.bf16.mxu0 0
        %1676 = vmatmul.mubr.bf16.gmra.mxu0 %v1512
        %v1677 = vpop.f32.mrf.mxu0
        %v1678 = vadd.f32 %v1635, %v1677
        %v1679 = vpop.f32.mrf.mxu0
        %v1680 = vadd.f32 %v1637, %v1679
        %v1681 = vpop.f32.mrf.mxu0
        %v1682 = vadd.f32 %v1639, %v1681
        %v1683 = vpop.f32.mrf.mxu0
        %v1684 = vadd.f32 %v1641, %v1683
        %1685 = vdwg.mxu0
        %1686 = vmatprep.subr.bf16.mxu0 %v1149
        %1687 = vmatpush1.bf16.msra.mxu0 %v1148
        %1688 = vmatprep.subr.bf16.mxu0 %v1145
        %1689 = vmatpush1.bf16.msra.mxu0 %v1144
        %1690 = vmatprep.subr.bf16.mxu0 %v1141
        %1691 = vmatpush1.bf16.msra.mxu0 %v1140
        %1692 = vmatprep.subr.bf16.mxu0 %v1137
        %1693 = vmatpush1.bf16.msra.mxu0 %v1136
        %1694 = vmatprep.subr.bf16.mxu0 %v1133
        %1695 = vmatpush1.bf16.msra.mxu0 %v1132
        %1696 = vmatprep.subr.bf16.mxu0 %v1129
        %1697 = vmatpush1.bf16.msra.mxu0 %v1128
        %1698 = vmatprep.subr.bf16.mxu0 %v1125
        %1699 = vmatpush1.bf16.msra.mxu0 %v1124
        %1700 = vmatprep.subr.bf16.mxu0 %v1121
        %1701 = vmatpush1.bf16.msra.mxu0 %v1120
        %1702 = vmatprep.subr.bf16.mxu0 %v1181
        %1703 = vmatpush2.bf16.msra.mxu0 %v1180
        %1704 = vmatprep.subr.bf16.mxu0 %v1177
        %1705 = vmatpush2.bf16.msra.mxu0 %v1176
        %1706 = vmatprep.subr.bf16.mxu0 %v1173
        %1707 = vmatpush2.bf16.msra.mxu0 %v1172
        %1708 = vmatprep.subr.bf16.mxu0 %v1169
        %1709 = vmatpush2.bf16.msra.mxu0 %v1168
        %1710 = vmatprep.subr.bf16.mxu0 %v1165
        %1711 = vmatpush2.bf16.msra.mxu0 %v1164
        %1712 = vmatprep.subr.bf16.mxu0 %v1161
        %1713 = vmatpush2.bf16.msra.mxu0 %v1160
        %1714 = vmatprep.subr.bf16.mxu0 %v1157
        %1715 = vmatpush2.bf16.msra.mxu0 %v1156
        %1716 = vmatprep.subr.bf16.mxu0 %v1153
        %1717 = vmatpush2.bf16.msra.mxu0 %v1152
        %1718 = vmatprep.mubr.bf16.mxu0 %v306
        %1719 = vmatmul.mubr.bf16.gmra.mxu0 %v305
        %v1720 = vpop.f32.mrf.mxu0
        %v1721 = vadd.f32 %v521, %v1720
        %v1722 = vpop.f32.mrf.mxu0
        %v1723 = vadd.f32 %v525, %v1722
        %v1724 = vpop.f32.mrf.mxu0
        %v1725 = vadd.f32 %v521, %v1724
        %v1726 = vpop.f32.mrf.mxu0
        %v1727 = vadd.f32 %v525, %v1726
        %1728 = vdwg.mxu0
        %1729 = vmatprep.subr.bf16.mxu0 %v1213
        %1730 = vmatpush1.bf16.msra.mxu0 %v1212
        %1731 = vmatprep.subr.bf16.mxu0 %v1209
        %1732 = vmatpush1.bf16.msra.mxu0 %v1208
        %1733 = vmatprep.subr.bf16.mxu0 %v1205
        %1734 = vmatpush1.bf16.msra.mxu0 %v1204
        %1735 = vmatprep.subr.bf16.mxu0 %v1201
        %1736 = vmatpush1.bf16.msra.mxu0 %v1200
        %1737 = vmatprep.subr.bf16.mxu0 %v1197
        %1738 = vmatpush1.bf16.msra.mxu0 %v1196
        %1739 = vmatprep.subr.bf16.mxu0 %v1193
        %1740 = vmatpush1.bf16.msra.mxu0 %v1192
        %1741 = vmatprep.subr.bf16.mxu0 %v1189
        %1742 = vmatpush1.bf16.msra.mxu0 %v1188
        %1743 = vmatprep.subr.bf16.mxu0 %v1185
        %1744 = vmatpush1.bf16.msra.mxu0 %v1184
        %1745 = vmatprep.subr.bf16.mxu0 %v1245
        %1746 = vmatpush2.bf16.msra.mxu0 %v1244
        %1747 = vmatprep.subr.bf16.mxu0 %v1241
        %1748 = vmatpush2.bf16.msra.mxu0 %v1240
        %1749 = vmatprep.subr.bf16.mxu0 %v1237
        %1750 = vmatpush2.bf16.msra.mxu0 %v1236
        %1751 = vmatprep.subr.bf16.mxu0 %v1233
        %1752 = vmatpush2.bf16.msra.mxu0 %v1232
        %1753 = vmatprep.subr.bf16.mxu0 %v1229
        %1754 = vmatpush2.bf16.msra.mxu0 %v1228
        %1755 = vmatprep.subr.bf16.mxu0 %v1225
        %1756 = vmatpush2.bf16.msra.mxu0 %v1224
        %1757 = vmatprep.subr.bf16.mxu0 %v1221
        %1758 = vmatpush2.bf16.msra.mxu0 %v1220
        %1759 = vmatprep.subr.bf16.mxu0 %v1217
        %1760 = vmatpush2.bf16.msra.mxu0 %v1216
        %1761 = vmatprep.mubr.bf16.mxu0 %v308
        %1762 = vmatmul.mubr.bf16.gmra.mxu0 %v307
        %v1763 = vpop.f32.mrf.mxu0
        %v1764 = vadd.f32 %v1721, %v1763
        %v1765 = vpop.f32.mrf.mxu0
        %v1766 = vadd.f32 %v1723, %v1765
        %v1767 = vpop.f32.mrf.mxu0
        %v1768 = vadd.f32 %v1725, %v1767
        %v1769 = vpop.f32.mrf.mxu0
        %v1770 = vadd.f32 %v1727, %v1769
        %1771 = vdwg.mxu0
        %1772 = vmatprep.subr.bf16.mxu0 %v1277
        %1773 = vmatpush1.bf16.msra.mxu0 %v1276
        %1774 = vmatprep.subr.bf16.mxu0 %v1273
        %1775 = vmatpush1.bf16.msra.mxu0 %v1272
        %1776 = vmatprep.subr.bf16.mxu0 %v1269
        %1777 = vmatpush1.bf16.msra.mxu0 %v1268
        %1778 = vmatprep.subr.bf16.mxu0 %v1265
        %1779 = vmatpush1.bf16.msra.mxu0 %v1264
        %1780 = vmatprep.subr.bf16.mxu0 %v1261
        %1781 = vmatpush1.bf16.msra.mxu0 %v1260
        %1782 = vmatprep.subr.bf16.mxu0 %v1257
        %1783 = vmatpush1.bf16.msra.mxu0 %v1256
        %1784 = vmatprep.subr.bf16.mxu0 %v1253
        %1785 = vmatpush1.bf16.msra.mxu0 %v1252
        %1786 = vmatprep.subr.bf16.mxu0 %v1249
        %1787 = vmatpush1.bf16.msra.mxu0 %v1248
        %1788 = vmatprep.subr.bf16.mxu0 %v1309
        %1789 = vmatpush2.bf16.msra.mxu0 %v1308
        %1790 = vmatprep.subr.bf16.mxu0 %v1305
        %1791 = vmatpush2.bf16.msra.mxu0 %v1304
        %1792 = vmatprep.subr.bf16.mxu0 %v1301
        %1793 = vmatpush2.bf16.msra.mxu0 %v1300
        %1794 = vmatprep.subr.bf16.mxu0 %v1297
        %1795 = vmatpush2.bf16.msra.mxu0 %v1296
        %1796 = vmatprep.subr.bf16.mxu0 %v1293
        %1797 = vmatpush2.bf16.msra.mxu0 %v1292
        %1798 = vmatprep.subr.bf16.mxu0 %v1289
        %1799 = vmatpush2.bf16.msra.mxu0 %v1288
        %1800 = vmatprep.subr.bf16.mxu0 %v1285
        %1801 = vmatpush2.bf16.msra.mxu0 %v1284
        %1802 = vmatprep.subr.bf16.mxu0 %v1281
        %1803 = vmatpush2.bf16.msra.mxu0 %v1280
        %1804 = vmatprep.mubr.bf16.mxu0 %v310
        %1805 = vmatmul.mubr.bf16.gmra.mxu0 %v309
        %v1806 = vpop.f32.mrf.mxu0
        %v1807 = vadd.f32 %v1764, %v1806
        %v1808 = vpop.f32.mrf.mxu0
        %v1809 = vadd.f32 %v1766, %v1808
        %v1810 = vpop.f32.mrf.mxu0
        %v1811 = vadd.f32 %v1768, %v1810
        %v1812 = vpop.f32.mrf.mxu0
        %v1813 = vadd.f32 %v1770, %v1812
        %1814 = vdwg.mxu0
        %1815 = vmatprep.subr.bf16.mxu0 0
        %1816 = vmatpush1.bf16.msra.mxu0 0
        %1817 = vmatprep.subr.bf16.mxu0 0
        %1818 = vmatpush1.bf16.msra.mxu0 0
        %1819 = vmatprep.subr.bf16.mxu0 0
        %1820 = vmatpush1.bf16.msra.mxu0 0
        %1821 = vmatprep.subr.bf16.mxu0 0
        %1822 = vmatpush1.bf16.msra.mxu0 0
        %1823 = vmatprep.subr.bf16.mxu0 0
        %1824 = vmatpush1.bf16.msra.mxu0 0
        %1825 = vmatprep.subr.bf16.mxu0 0
        %1826 = vmatpush1.bf16.msra.mxu0 0
        %1827 = vmatprep.subr.bf16.mxu0 0
        %1828 = vmatpush1.bf16.msra.mxu0 0
        %1829 = vmatprep.subr.bf16.mxu0 %v1313
        %1830 = vmatpush1.bf16.msra.mxu0 %v1312
        %1831 = vmatprep.subr.bf16.mxu0 0
        %1832 = vmatpush2.bf16.msra.mxu0 0
        %1833 = vmatprep.subr.bf16.mxu0 0
        %1834 = vmatpush2.bf16.msra.mxu0 0
        %1835 = vmatprep.subr.bf16.mxu0 0
        %1836 = vmatpush2.bf16.msra.mxu0 0
        %1837 = vmatprep.subr.bf16.mxu0 0
        %1838 = vmatpush2.bf16.msra.mxu0 0
        %1839 = vmatprep.subr.bf16.mxu0 0
        %1840 = vmatpush2.bf16.msra.mxu0 0
        %1841 = vmatprep.subr.bf16.mxu0 0
        %1842 = vmatpush2.bf16.msra.mxu0 0
        %1843 = vmatprep.subr.bf16.mxu0 0
        %1844 = vmatpush2.bf16.msra.mxu0 0
        %1845 = vmatprep.subr.bf16.mxu0 0
        %1846 = vmatpush2.bf16.msra.mxu0 0
        %1847 = vmatprep.mubr.bf16.mxu0 0
        %1848 = vmatmul.mubr.bf16.gmra.mxu0 %v1512
        %v1849 = vpop.f32.mrf.mxu0
        %v1850 = vadd.f32 %v1807, %v1849
        %v1851 = vpop.f32.mrf.mxu0
        %v1852 = vadd.f32 %v1809, %v1851
        %v1853 = vpop.f32.mrf.mxu0
        %v1854 = vadd.f32 %v1811, %v1853
        %v1855 = vpop.f32.mrf.mxu0
        %v1856 = vadd.f32 %v1813, %v1855
        %1857 = vdwg.mxu0
        %v1858 = vmax.f32 %v1678, 0.0
        %v1859 = vmax.f32 %v1680, 0.0
        %v1860 = vmax.f32 %v1850, 0.0
        %v1861 = vmax.f32 %v1852, 0.0
        %v1862 = vmax.f32 %v1682, 0.0
        %v1863 = vmax.f32 %v1684, 0.0
        %v1864 = vmax.f32 %v1854, 0.0
        %v1865 = vmax.f32 %v1856, 0.0
        %v1866 = vpack.c.bf16 %v1862, %v1858
        %v1867 = vpack.c.bf16 %v1863, %v1859
        %v1868 = vpack.c.bf16 %v1864, %v1860
        %v1869 = vpack.c.bf16 %v1865, %v1861
        %v1870 = vld [vmem:[#allocation7] sm:$0xf]
        %v1871 = vld [vmem:[#allocation7 + $0x4] sm:$0xf]
        %v1872 = vld [vmem:[#allocation7 + $0x8] sm:$0xf]
        %v1873 = vld [vmem:[#allocation7 + $0xc] sm:$0xf]
        %v1874 = vld [vmem:[#allocation7 + $0x10] sm:$0xf]
        %v1875 = vld [vmem:[#allocation7 + $0x14] sm:$0xf]
        %v1876 = vld [vmem:[#allocation7 + $0x18] sm:$0xf]
        %v1877 = vld [vmem:[#allocation7 + $0x1c] sm:$0xf]
        %v1878 = vld [vmem:[#allocation7 + $0x20] sm:$0xf]
        %v1879 = vld [vmem:[#allocation7 + $0x24] sm:$0xf]
        %v1880 = vld [vmem:[#allocation7 + $0x28] sm:$0xf]
        %v1881 = vld [vmem:[#allocation7 + $0x2c] sm:$0xf]
        %v1882 = vld [vmem:[#allocation7 + $0x30] sm:$0xf]
        %v1883 = vld [vmem:[#allocation7 + $0x34] sm:$0xf]
        %v1884 = vld [vmem:[#allocation7 + $0x38] sm:$0xf]
        %v1885 = vld [vmem:[#allocation7 + $0x3c] sm:$0xf]
        %v1886 = vld [vmem:[#allocation7 + $0x40] sm:$0xf]
        %v1887 = vld [vmem:[#allocation7 + $0x44] sm:$0xf]
        %v1888 = vld [vmem:[#allocation7 + $0x48] sm:$0xf]
        %v1889 = vld [vmem:[#allocation7 + $0x4c] sm:$0xf]
        %v1890 = vld [vmem:[#allocation7 + $0x50] sm:$0xf]
        %v1891 = vld [vmem:[#allocation7 + $0x54] sm:$0xf]
        %v1892 = vld [vmem:[#allocation7 + $0x58] sm:$0xf]
        %v1893 = vld [vmem:[#allocation7 + $0x5c] sm:$0xf]
        %v1894 = vld [vmem:[#allocation7 + $0x60] sm:$0xf]
        %v1895 = vld [vmem:[#allocation7 + $0x64] sm:$0xf]
        %v1896 = vld [vmem:[#allocation7 + $0x68] sm:$0xf]
        %v1897 = vld [vmem:[#allocation7 + $0x6c] sm:$0xf]
        %v1898 = vld [vmem:[#allocation7 + $0x70] sm:$0xf]
        %v1899 = vld [vmem:[#allocation7 + $0x74] sm:$0xf]
        %v1900 = vld [vmem:[#allocation7 + $0x78] sm:$0xf]
        %v1901 = vld [vmem:[#allocation7 + $0x7c] sm:$0xf]
        %v1902 = vld [vmem:[#allocation7 + $0x80] sm:$0xf]
        %v1903 = vld [vmem:[#allocation7 + $0x84] sm:$0xf]
        %v1904 = vld [vmem:[#allocation7 + $0x88] sm:$0xf]
        %v1905 = vld [vmem:[#allocation7 + $0x8c] sm:$0xf]
        %v1906 = vld [vmem:[#allocation7 + $0x90] sm:$0xf]
        %v1907 = vld [vmem:[#allocation7 + $0x94] sm:$0xf]
        %v1908 = vld [vmem:[#allocation7 + $0x98] sm:$0xf]
        %v1909 = vld [vmem:[#allocation7 + $0x9c] sm:$0xf]
        %v1910 = vld [vmem:[#allocation7 + $0xa0] sm:$0xf]
        %v1911 = vld [vmem:[#allocation7 + $0xa4] sm:$0xf]
        %v1912 = vld [vmem:[#allocation7 + $0xa8] sm:$0xf]
        %v1913 = vld [vmem:[#allocation7 + $0xac] sm:$0xf]
        %v1914 = vld [vmem:[#allocation7 + $0xb0] sm:$0xf]
        %v1915 = vld [vmem:[#allocation7 + $0xb4] sm:$0xf]
        %v1916 = vld [vmem:[#allocation7 + $0xb8] sm:$0xf]
        %v1917 = vld [vmem:[#allocation7 + $0xbc] sm:$0xf]
        %v1918 = vld [vmem:[#allocation7 + $0xc0] sm:$0xf]
        %v1919 = vld [vmem:[#allocation7 + $0xc4] sm:$0xf]
        %v1920 = vld [vmem:[#allocation7 + $0xc8] sm:$0xf]
        %v1921 = vld [vmem:[#allocation7 + $0xcc] sm:$0xf]
        %v1922 = vld [vmem:[#allocation7 + $0xd0] sm:$0xf]
        %v1923 = vld [vmem:[#allocation7 + $0xd4] sm:$0xf]
        %v1924 = vld [vmem:[#allocation7 + $0xd8] sm:$0xf]
        %v1925 = vld [vmem:[#allocation7 + $0xdc] sm:$0xf]
        %v1926 = vld [vmem:[#allocation7 + $0xe0] sm:$0xf]
        %v1927 = vld [vmem:[#allocation7 + $0xe4] sm:$0xf]
        %v1928 = vld [vmem:[#allocation7 + $0xe8] sm:$0xf]
        %v1929 = vld [vmem:[#allocation7 + $0xec] sm:$0xf]
        %v1930 = vld [vmem:[#allocation7 + $0xf0] sm:$0xf]
        %v1931 = vld [vmem:[#allocation7 + $0xf4] sm:$0xf]
        %v1932 = vld [vmem:[#allocation7 + $0xf8] sm:$0xf]
        %v1933 = vld [vmem:[#allocation7 + $0xfc] sm:$0xf]
        %v1934 = vld [vmem:[%s4] sm:$0x1]
        %v1936 = vlaneseq
        %v1937 = vshrl.u32 %v1936, 7
        %v1938 = vsub.s32 0, %v1937
        %v1939 = vrot.slane %v1934, %v1938
        %v2005 = vunpack.c.l.b16 %v1870
        %v2006 = vunpack.c.l.b16 %v1871
        %v2007 = vunpack.c.l.b16 %v1872
        %v2008 = vunpack.c.l.b16 %v1873
        %v2009 = vunpack.c.l.b16 %v1874
        %v2010 = vunpack.c.l.b16 %v1875
        %v2011 = vunpack.c.l.b16 %v1876
        %v2012 = vunpack.c.l.b16 %v1877
        %v2013 = vunpack.c.l.b16 %v1878
        %v2014 = vunpack.c.l.b16 %v1879
        %v2015 = vunpack.c.l.b16 %v1880
        %v2016 = vunpack.c.l.b16 %v1881
        %v2017 = vunpack.c.l.b16 %v1882
        %v2018 = vunpack.c.l.b16 %v1883
        %v2019 = vunpack.c.l.b16 %v1884
        %v2020 = vunpack.c.l.b16 %v1885
        %v2021 = vunpack.c.l.b16 %v1886
        %v2022 = vunpack.c.l.b16 %v1887
        %v2023 = vunpack.c.l.b16 %v1888
        %v2024 = vunpack.c.l.b16 %v1889
        %v2025 = vunpack.c.l.b16 %v1890
        %v2026 = vunpack.c.l.b16 %v1891
        %v2027 = vunpack.c.l.b16 %v1892
        %v2028 = vunpack.c.l.b16 %v1893
        %v2029 = vunpack.c.l.b16 %v1894
        %v2030 = vunpack.c.l.b16 %v1895
        %v2031 = vunpack.c.l.b16 %v1896
        %v2032 = vunpack.c.l.b16 %v1897
        %v2033 = vunpack.c.l.b16 %v1898
        %v2034 = vunpack.c.l.b16 %v1899
        %v2035 = vunpack.c.l.b16 %v1900
        %v2036 = vunpack.c.l.b16 %v1901
        %v2037 = vunpack.c.l.b16 %v1902
        %v2038 = vunpack.c.l.b16 %v1903
        %v2039 = vunpack.c.l.b16 %v1904
        %v2040 = vunpack.c.l.b16 %v1905
        %v2041 = vunpack.c.l.b16 %v1906
        %v2042 = vunpack.c.l.b16 %v1907
        %v2043 = vunpack.c.l.b16 %v1908
        %v2044 = vunpack.c.l.b16 %v1909
        %v2045 = vunpack.c.l.b16 %v1910
        %v2046 = vunpack.c.l.b16 %v1911
        %v2047 = vunpack.c.l.b16 %v1912
        %v2048 = vunpack.c.l.b16 %v1913
        %v2049 = vunpack.c.l.b16 %v1914
        %v2050 = vunpack.c.l.b16 %v1915
        %v2051 = vunpack.c.l.b16 %v1916
        %v2052 = vunpack.c.l.b16 %v1917
        %v2053 = vunpack.c.l.b16 %v1918
        %v2054 = vunpack.c.l.b16 %v1919
        %v2055 = vunpack.c.l.b16 %v1920
        %v2056 = vunpack.c.l.b16 %v1921
        %v2057 = vunpack.c.l.b16 %v1922
        %v2058 = vunpack.c.l.b16 %v1923
        %v2059 = vunpack.c.l.b16 %v1924
        %v2060 = vunpack.c.l.b16 %v1925
        %v2061 = vunpack.c.l.b16 %v1926
        %v2062 = vunpack.c.l.b16 %v1927
        %v2063 = vunpack.c.l.b16 %v1928
        %v2064 = vunpack.c.l.b16 %v1929
        %v2065 = vunpack.c.l.b16 %v1930
        %v2066 = vunpack.c.l.b16 %v1931
        %v2067 = vunpack.c.l.b16 %v1932
        %v2068 = vunpack.c.l.b16 %v1933
        %v2069 = vpack.c.b16 %v2006, %v2005
        %v2070 = vpack.c.b16 %v2008, %v2007
        %v2071 = vpack.c.b16 %v2010, %v2009
        %v2072 = vpack.c.b16 %v2012, %v2011
        %v2073 = vpack.c.b16 %v2014, %v2013
        %v2074 = vpack.c.b16 %v2016, %v2015
        %v2075 = vpack.c.b16 %v2018, %v2017
        %v2076 = vpack.c.b16 %v2020, %v2019
        %v2077 = vpack.c.b16 %v2022, %v2021
        %v2078 = vpack.c.b16 %v2024, %v2023
        %v2079 = vpack.c.b16 %v2026, %v2025
        %v2080 = vpack.c.b16 %v2028, %v2027
        %v2081 = vpack.c.b16 %v2030, %v2029
        %v2082 = vpack.c.b16 %v2032, %v2031
        %v2083 = vpack.c.b16 %v2034, %v2033
        %v2084 = vpack.c.b16 %v2036, %v2035
        %v2085 = vpack.c.b16 %v2038, %v2037
        %v2086 = vpack.c.b16 %v2040, %v2039
        %v2087 = vpack.c.b16 %v2042, %v2041
        %v2088 = vpack.c.b16 %v2044, %v2043
        %v2089 = vpack.c.b16 %v2046, %v2045
        %v2090 = vpack.c.b16 %v2048, %v2047
        %v2091 = vpack.c.b16 %v2050, %v2049
        %v2092 = vpack.c.b16 %v2052, %v2051
        %v2093 = vpack.c.b16 %v2054, %v2053
        %v2094 = vpack.c.b16 %v2056, %v2055
        %v2095 = vpack.c.b16 %v2058, %v2057
        %v2096 = vpack.c.b16 %v2060, %v2059
        %v2097 = vpack.c.b16 %v2062, %v2061
        %v2098 = vpack.c.b16 %v2064, %v2063
        %v2099 = vpack.c.b16 %v2066, %v2065
        %v2100 = vpack.c.b16 %v2068, %v2067
        %2133 = vmatprep.subr.bf16.mxu0 0
        %2134 = vmatpush1.bf16.msra.mxu0 %v2076
        %2135 = vmatprep.subr.bf16.mxu0 0
        %2136 = vmatpush1.bf16.msra.mxu0 %v2075
        %2137 = vmatprep.subr.bf16.mxu0 0
        %2138 = vmatpush1.bf16.msra.mxu0 %v2074
        %2139 = vmatprep.subr.bf16.mxu0 0
        %2140 = vmatpush1.bf16.msra.mxu0 %v2073
        %2141 = vmatprep.subr.bf16.mxu0 0
        %2142 = vmatpush1.bf16.msra.mxu0 %v2072
        %2143 = vmatprep.subr.bf16.mxu0 0
        %2144 = vmatpush1.bf16.msra.mxu0 %v2071
        %2145 = vmatprep.subr.bf16.mxu0 0
        %2146 = vmatpush1.bf16.msra.mxu0 %v2070
        %2147 = vmatprep.subr.bf16.mxu0 0
        %2148 = vmatpush1.bf16.msra.mxu0 %v2069
        %2149 = vmatprep.subr.bf16.mxu0 0
        %2150 = vmatpush2.bf16.msra.mxu0 %v2084
        %2151 = vmatprep.subr.bf16.mxu0 0
        %2152 = vmatpush2.bf16.msra.mxu0 %v2083
        %2153 = vmatprep.subr.bf16.mxu0 0
        %2154 = vmatpush2.bf16.msra.mxu0 %v2082
        %2155 = vmatprep.subr.bf16.mxu0 0
        %2156 = vmatpush2.bf16.msra.mxu0 %v2081
        %2157 = vmatprep.subr.bf16.mxu0 0
        %2158 = vmatpush2.bf16.msra.mxu0 %v2080
        %2159 = vmatprep.subr.bf16.mxu0 0
        %2160 = vmatpush2.bf16.msra.mxu0 %v2079
        %2161 = vmatprep.subr.bf16.mxu0 0
        %2162 = vmatpush2.bf16.msra.mxu0 %v2078
        %2163 = vmatprep.subr.bf16.mxu0 0
        %2164 = vmatpush2.bf16.msra.mxu0 %v2077
        %2165 = vmatprep.mubr.bf16.mxu0 %v1867
        %2166 = vmatmul.mubr.bf16.gmra.mxu0 %v1866
        %v2167 = vpop.f32.mrf.mxu0
        %v2168 = vadd.f32 %v1939, %v2167
        %v2169 = vpop.f32.mrf.mxu0
        %v2170 = vpop.f32.mrf.mxu0
        %v2171 = vadd.f32 %v1939, %v2170
        %v2172 = vpop.f32.mrf.mxu0
        %2173 = vdwg.mxu0
        %2174 = vmatprep.subr.bf16.mxu0 0
        %2175 = vmatpush1.bf16.msra.mxu0 %v2092
        %2176 = vmatprep.subr.bf16.mxu0 0
        %2177 = vmatpush1.bf16.msra.mxu0 %v2091
        %2178 = vmatprep.subr.bf16.mxu0 0
        %2179 = vmatpush1.bf16.msra.mxu0 %v2090
        %2180 = vmatprep.subr.bf16.mxu0 0
        %2181 = vmatpush1.bf16.msra.mxu0 %v2089
        %2182 = vmatprep.subr.bf16.mxu0 0
        %2183 = vmatpush1.bf16.msra.mxu0 %v2088
        %2184 = vmatprep.subr.bf16.mxu0 0
        %2185 = vmatpush1.bf16.msra.mxu0 %v2087
        %2186 = vmatprep.subr.bf16.mxu0 0
        %2187 = vmatpush1.bf16.msra.mxu0 %v2086
        %2188 = vmatprep.subr.bf16.mxu0 0
        %2189 = vmatpush1.bf16.msra.mxu0 %v2085
        %2190 = vmatprep.subr.bf16.mxu0 0
        %2191 = vmatpush2.bf16.msra.mxu0 %v2100
        %2192 = vmatprep.subr.bf16.mxu0 0
        %2193 = vmatpush2.bf16.msra.mxu0 %v2099
        %2194 = vmatprep.subr.bf16.mxu0 0
        %2195 = vmatpush2.bf16.msra.mxu0 %v2098
        %2196 = vmatprep.subr.bf16.mxu0 0
        %2197 = vmatpush2.bf16.msra.mxu0 %v2097
        %2198 = vmatprep.subr.bf16.mxu0 0
        %2199 = vmatpush2.bf16.msra.mxu0 %v2096
        %2200 = vmatprep.subr.bf16.mxu0 0
        %2201 = vmatpush2.bf16.msra.mxu0 %v2095
        %2202 = vmatprep.subr.bf16.mxu0 0
        %2203 = vmatpush2.bf16.msra.mxu0 %v2094
        %2204 = vmatprep.subr.bf16.mxu0 0
        %2205 = vmatpush2.bf16.msra.mxu0 %v2093
        %2206 = vmatprep.mubr.bf16.mxu0 %v1869
        %2207 = vmatmul.mubr.bf16.gmra.mxu0 %v1868
        %v2208 = vpop.f32.mrf.mxu0
        %v2209 = vadd.f32 %v2168, %v2208
        %v2210 = vpop.f32.mrf.mxu0
        %v2211 = vpop.f32.mrf.mxu0
        %v2212 = vadd.f32 %v2171, %v2211
        %v2213 = vpop.f32.mrf.mxu0
        %2214 = vdwg.mxu0
        %2215 = vst [vmem:[%s288] sm:$0xff] %v2209
        %2216 = vst [vmem:[%s288 + $0x8] sm:$0xff] %v2212
        %s2217 = smul.u32 2, %s21
        %p2218 = scmp.lt.s32.totalorder %s2217, 3
        %s2219 = scalar_select %p2218, %s2217, 3
        %s2220 = smul.addr %s2219, 8
        %s2221 = scalar_lea.vmem %s5, %s2220
        // Predicated region
        $region57: #{neural_net_forward.1} parent=39 // pred_check
          %p2222 = pneg %p149
        $region58: #{neural_net_forward.1} parent=39 // pred_check_branch
          %2224 = sbr.rel (%p2222) target = $region60
        $region59: #{neural_net_forward.1} parent=39 // pred_region
          %s2225 = smul.u32 2, %s21
        $region60: #{neural_net_forward.1} parent=39 // pred_fallthru
          _
      $region40: #{neural_net_forward.1} parent=5 // pred_fallthru
        _
      %p2226 = scmp.le.s32.totalorder 2, %s16
      // Predicated region
      $region61: #{neural_net_forward.1} parent=5 // pred_check
        %p2227 = pneg %p2226
      $region62: #{neural_net_forward.1} parent=5 // pred_check_branch
        %2229 = sbr.rel (%p2227) target = $region64
      $region63: #{neural_net_forward.1} parent=5 // pred_region
        %s2230 = ssub.s32 %s16, 2
        // Predicated region
        $region65: #{neural_net_forward.1} parent=63 // pred_check
          %p2231 = pneg %p155
        $region66: #{neural_net_forward.1} parent=63 // pred_check_branch
          %2233 = sbr.rel (%p2231) target = $region68
        $region67: #{neural_net_forward.1} parent=63 // pred_region
          %s2234 = smul.u32 2, %s22
          %p2235 = scmp.lt.s32.totalorder %s2234, 3
          %s2236 = scalar_select %p2235, %s2234, 3
          %s2237 = smul.addr %s2236, 8
          %s2238 = scalar_lea.vmem %s5, %s2237
        $region68: #{neural_net_forward.1} parent=63 // pred_fallthru
          _
      $region64: #{neural_net_forward.1} parent=5 // pred_fallthru
        _
    $region6: #{neural_net_forward.1} parent=1 // loop_footer
      %s20 = sadd.s32 1, %s16
    $region7: #{neural_net_forward.1} parent=1 // loop_footer_branch
      %15 = sbr.rel target = $region3
    $region8: #{neural_net_forward.1} parent=1 // loop_exit
      _
    %2239 = vsyncpa [#allocation3], 1
    %s2240 = scalar_lea.sflag [#allocation3], 1
    %2241 = vsyncpa %s2240, 1
    %2242 = vsyncpa [#allocation5], 1
    %2243 = vsyncpa [#allocation8], 1

</llo_original>
